<compile_context>
chip_gen: v5e
topology: v5e:2x2
jax: 0.10.0
libtpu: 0.0.40
codegen_flags: <defaults>
</compile_context>

<pallas_src>
import math
import jax
import jax.numpy as jnp
from jax.experimental import pallas as pl
from jax.experimental.pallas import tpu as pltpu

# ---- small synthetic config (bert-base would be H=768, NH=12, I=3072, L=12) ----
B = 2            # batch
S = 8            # sequence length
H = 32           # hidden
NH = 2           # attention heads
DH = H // NH     # head dim
I = 64           # FFN intermediate
L = 2            # encoder layers
VOCAB = 64
MAXPOS = 16
NTYPES = 2
NTAGS = 1        # len(tag_dic) == 1  ({'padding': 0})
NOUT_PAD = 128   # lane-dense padded output width for the NSP head
LN_EPS = 1e-12
BS = B * S


# ----------------------------- in-kernel helpers -----------------------------
def _layernorm(x, g, b):
    # one-pass variance: var = E[x^2] - mu^2 (single pair of lane reductions)
    mu = jnp.mean(x, axis=-1, keepdims=True)
    var = jnp.mean(x * x, axis=-1, keepdims=True) - mu * mu
    return (x - mu) * jax.lax.rsqrt(var + LN_EPS) * g + b


def _gelu(x):
    # TODO(synk): HF BERT uses the exact erf GELU; tanh approximation kept for a
    # TPU-friendly EUP lowering.
    c = math.sqrt(2.0 / math.pi)
    return 0.5 * x * (1.0 + jnp.tanh(c * (x + 0.044715 * x * x * x)))


# --------------------------------- fused kernel --------------------------------
def bertlm_kernel(emb_ref, embln_ref, wqkv_ref, vecs_ref, wo_ref,
                  w1_ref, b1_ref, w2_ref, nspw_ref, nspb_ref,
                  o_ref, x_sc):
    l = pl.program_id(1)

    # first layer step: embedding LayerNorm initialises the residual stream
    @pl.when(l == 0)
    def _():
        embln = embln_ref[...]                                        # [2, H]
        x_sc[...] = _layernorm(emb_ref[...], embln[0:1, :], embln[1:2, :])

    x = x_sc[...]                                                     # [S, H] f32
    vecs = vecs_ref[...]                                              # [9, H]
    bq, bk, bv = vecs[0:1, :], vecs[1:2, :], vecs[2:3, :]
    bo, ln1g, ln1b = vecs[3:4, :], vecs[4:5, :], vecs[5:6, :]
    b2, ln2g, ln2b = vecs[6:7, :], vecs[7:8, :], vecs[8:9, :]

    xb = x.astype(jnp.bfloat16)
    # Q/K/V: three 2-D matmuls; the Q/K/V split is a free leading-axis index of
    # the weight slab (no non-aligned lane slicing of a fused output).
    q = jnp.dot(xb, wqkv_ref[0], preferred_element_type=jnp.float32) + bq   # [S, H]
    k = jnp.dot(xb, wqkv_ref[1], preferred_element_type=jnp.float32) + bk
    v = jnp.dot(xb, wqkv_ref[2], preferred_element_type=jnp.float32) + bv

    # heads-leading tensors for the batched attention einsums
    qh = jnp.stack([q[:, h * DH:(h + 1) * DH] for h in range(NH)], 0).astype(jnp.bfloat16)
    kh = jnp.stack([k[:, h * DH:(h + 1) * DH] for h in range(NH)], 0).astype(jnp.bfloat16)
    vh = jnp.stack([v[:, h * DH:(h + 1) * DH] for h in range(NH)], 0).astype(jnp.bfloat16)

    s = jnp.einsum('hqd,hkd->hqk', qh, kh,
                   preferred_element_type=jnp.float32) * (1.0 / math.sqrt(DH))
    s = s - jnp.max(s, axis=-1, keepdims=True)
    p = jnp.exp(s)
    p = p * pl.reciprocal(jnp.sum(p, axis=-1, keepdims=True), approx=True)
    ctx = jnp.einsum('hqk,hkd->hqd', p.astype(jnp.bfloat16), vh,
                     preferred_element_type=jnp.float32)              # [NH, S, DH]

    # single output-projection matmul over the full hidden dim
    ctx2d = jnp.concatenate([ctx[h] for h in range(NH)], axis=-1)     # [S, H]
    attn = jnp.dot(ctx2d.astype(jnp.bfloat16), wo_ref[...],
                   preferred_element_type=jnp.float32) + bo
    y = _layernorm(x + attn, ln1g, ln1b)

    # -------------------------- feed-forward ---------------------------------
    h1 = jnp.dot(y.astype(jnp.bfloat16), w1_ref[...],
                 preferred_element_type=jnp.float32) + b1_ref[...]    # [S, I]
    h1 = _gelu(h1)
    h2 = jnp.dot(h1.astype(jnp.bfloat16), w2_ref[...],
                 preferred_element_type=jnp.float32) + b2             # [S, H]
    x_new = _layernorm(y + h2, ln2g, ln2b)
    x_sc[...] = x_new

    # last layer step: NSP head, lane-dense padded output (wrapper slices to NTAGS)
    @pl.when(l == pl.num_programs(1) - 1)
    def _():
        o_ref[...] = jnp.dot(x_new.astype(jnp.bfloat16), nspw_ref[...],
                             preferred_element_type=jnp.float32) + nspb_ref[...]


# ------------------------------ pallas wrapper --------------------------------
def bertlm_forward(params, input_ids, seg):
    # Bert.forward ignores `seg` (calls self.bert(x)); token_type defaults to 0,
    # attention_mask defaults to all-ones (no masking).
    del seg
    # TODO(synk): embedding gather stays in JAX (no clean Pallas gather at this scale).
    word = jnp.take(params["word_emb"], input_ids, axis=0)            # [B, S, H]
    pos = params["pos_emb"][:S][None, :, :]                           # [1, S, H]
    typ = params["type_emb"][0][None, None, :]                        # [1, 1, H]
    emb = (word + pos + typ).reshape(BS, H)                           # [BS, H]

    ins = [emb, params["emb_ln"], params["wqkv"], params["vecs"], params["wo"],
           params["w1"], params["b1"], params["w2"],
           params["nsp_w"], params["nsp_b"]]

    in_specs = [
        pl.BlockSpec((S, H), lambda b, l: (b, 0)),                    # emb (per sample)
        pl.BlockSpec((2, H), lambda b, l: (0, 0)),                    # emb LayerNorm
        pl.BlockSpec((None, 3, H, H), lambda b, l: (l, 0, 0, 0)),     # wq/wk/wv
        pl.BlockSpec((None, 9, H), lambda b, l: (l, 0, 0)),           # biases + LN vecs
        pl.BlockSpec((None, H, H), lambda b, l: (l, 0, 0)),           # wo
        pl.BlockSpec((None, H, I), lambda b, l: (l, 0, 0)),           # w1
        pl.BlockSpec((None, 1, I), lambda b, l: (l, 0, 0)),           # b1
        pl.BlockSpec((None, I, H), lambda b, l: (l, 0, 0)),           # w2
        pl.BlockSpec((H, NOUT_PAD), lambda b, l: (0, 0)),             # nsp weight (padded)
        pl.BlockSpec((1, NOUT_PAD), lambda b, l: (0, 0)),             # nsp bias (padded)
    ]

    flops = B * L * (3 * 2 * S * H * H + 2 * (2 * S * S * H) + 2 * S * H * H
                     + 2 * S * H * I + 2 * S * I * H) + B * 2 * S * H * NOUT_PAD
    bytes_acc = int(sum(int(a.size) * a.dtype.itemsize for a in ins)) + BS * NOUT_PAD * 4
    cost = pl.CostEstimate(flops=int(flops),
                           transcendentals=int(B * L * (NH * S * S + S * I)),
                           bytes_accessed=bytes_acc)

    out = pl.pallas_call(
        bertlm_kernel,
        out_shape=jax.ShapeDtypeStruct((BS, NOUT_PAD), jnp.float32),
        grid=(B, L),
        in_specs=in_specs,
        out_specs=pl.BlockSpec((S, NOUT_PAD), lambda b, l: (b, 0)),
        scratch_shapes=[pltpu.VMEM((S, H), jnp.float32)],             # residual stream
        compiler_params=pltpu.CompilerParams(
            dimension_semantics=("parallel", "arbitrary"),
            vmem_limit_bytes=48 * 1024 * 1024),
        cost_estimate=cost,
    )(*ins)
    return out[:, :NTAGS].reshape(B, S, NTAGS)                        # [B, S, NTAGS]


# ------------------------------ parameter setup -------------------------------
def make_params(key):
    keys = iter(jax.random.split(key, 8 + 12 * L))

    def dense(shape, scale=0.02):
        return scale * jax.random.normal(next(keys), shape, jnp.float32)

    params = {
        "word_emb": dense((VOCAB, H)),
        "pos_emb": dense((MAXPOS, H)),
        "type_emb": dense((NTYPES, H)),
        "emb_ln": jnp.concatenate([jnp.ones((1, H), jnp.float32),
                                   jnp.zeros((1, H), jnp.float32)], axis=0),
    }

    wqkv_l, vecs_l, wo_l, w1_l, b1_l, w2_l = [], [], [], [], [], []
    for _ in range(L):
        wq, wk, wv = dense((H, H)), dense((H, H)), dense((H, H))
        wqkv_l.append(jnp.stack([wq, wk, wv], axis=0))        # [3, H, H]
        wo_l.append(dense((H, H)))                            # [H, H] (2-D, per review)
        vecs_l.append(jnp.stack([
            dense((H,)),                     # bq
            dense((H,)),                     # bk
            dense((H,)),                     # bv
            dense((H,)),                     # bo
            jnp.ones((H,), jnp.float32),     # ln1 gamma
            jnp.zeros((H,), jnp.float32),    # ln1 beta
            dense((H,)),                     # b2 (FFN output bias)
            jnp.ones((H,), jnp.float32),     # ln2 gamma
            jnp.zeros((H,), jnp.float32),    # ln2 beta
        ], axis=0))                                           # [9, H]
        w1_l.append(dense((H, I)))
        b1_l.append(dense((1, I)))
        w2_l.append(dense((I, H)))

    params.update({
        "wqkv": jnp.stack(wqkv_l).astype(jnp.bfloat16),   # [L, 3, H, H]
        "vecs": jnp.stack(vecs_l),                        # [L, 9, H]
        "wo": jnp.stack(wo_l).astype(jnp.bfloat16),       # [L, H, H]
        "w1": jnp.stack(w1_l).astype(jnp.bfloat16),       # [L, H, I]
        "b1": jnp.stack(b1_l),                            # [L, 1, I]
        "w2": jnp.stack(w2_l).astype(jnp.bfloat16),       # [L, I, H]
    })

    # NextSentencePrediction: nn.Linear(H, len(tag_dic)) with xavier_normal_ weight,
    # zero-padded to a lane-dense 128-wide slab.
    nsp_w = math.sqrt(2.0 / (H + NTAGS)) * jax.random.normal(
        next(keys), (H, NTAGS), jnp.float32)
    params["nsp_w"] = jnp.pad(nsp_w, ((0, 0), (0, NOUT_PAD - NTAGS))).astype(jnp.bfloat16)
    params["nsp_b"] = jnp.zeros((1, NOUT_PAD), jnp.float32)
    return params


# ------------------------------- entry point -----------------------------------
if __name__ == "__main__":
    key = jax.random.PRNGKey(0)
    kp, ki, ks = jax.random.split(key, 3)
    params = make_params(kp)
    input_ids = jax.random.randint(ki, (B, S), 0, VOCAB)
    seg = jax.random.randint(ks, (B, S), 0, NTYPES)

    out = bertlm_forward(params, input_ids, seg)
    jax.block_until_ready(out)
    assert out.shape == (B, S, NTAGS), out.shape
    assert bool(jnp.all(jnp.isfinite(out))), "non-finite output"
    print("KERNEL_OK")
</pallas_src>

<mosaic_0001>
module attributes {stable_mosaic.version = 11 : i64} {
  func.func @bertlm_kernel(%arg0: i32, %arg1: i32, %arg2: memref<8x32xf32, #tpu.memory_space<vmem>>, %arg3: memref<2x32xf32, #tpu.memory_space<vmem>>, %arg4: memref<1x3x32x32xbf16, #tpu.memory_space<vmem>>, %arg5: memref<1x9x32xf32, #tpu.memory_space<vmem>>, %arg6: memref<1x32x32xbf16, #tpu.memory_space<vmem>>, %arg7: memref<1x32x64xbf16, #tpu.memory_space<vmem>>, %arg8: memref<1x1x64xf32, #tpu.memory_space<vmem>>, %arg9: memref<1x64x32xbf16, #tpu.memory_space<vmem>>, %arg10: memref<32x128xbf16, #tpu.memory_space<vmem>>, %arg11: memref<1x128xf32, #tpu.memory_space<vmem>>, %arg12: memref<8x128xf32, #tpu.memory_space<vmem>>, %arg13: memref<8x32xf32, #tpu.memory_space<vmem>>) attributes {dimension_semantics = [#tpu.dimension_semantics<parallel>, #tpu.dimension_semantics<arbitrary>], iteration_bounds = array<i64: 2, 2>, scalar_prefetch = 0 : i64, scratch_operands = 1 : i64, tpu.core_type = #tpu.core_type<tc>, window_params = [{transform_indices = @transform_0, window_bounds = array<i64: 8, 32>}, {pipeline_mode = #tpu.pipeline_mode<synchronous>, transform_indices = @transform_1, window_bounds = array<i64: 2, 32>}, {transform_indices = @transform_2, window_bounds = array<i64: 1, 3, 32, 32>}, {transform_indices = @transform_3, window_bounds = array<i64: 1, 9, 32>}, {transform_indices = @transform_4, window_bounds = array<i64: 1, 32, 32>}, {transform_indices = @transform_5, window_bounds = array<i64: 1, 32, 64>}, {transform_indices = @transform_6, window_bounds = array<i64: 1, 1, 64>}, {transform_indices = @transform_7, window_bounds = array<i64: 1, 64, 32>}, {pipeline_mode = #tpu.pipeline_mode<synchronous>, transform_indices = @transform_8, window_bounds = array<i64: 32, 128>}, {pipeline_mode = #tpu.pipeline_mode<synchronous>, transform_indices = @transform_9, window_bounds = array<i64: 1, 128>}, {transform_indices = @transform_10, window_bounds = array<i64: 8, 128>}]} {
    %c0_i32 = arith.constant 0 : i32
    %0 = arith.cmpi eq, %arg1, %c0_i32 : i32
    %1 = arith.extui %0 : i1 to i32
    %c0_i32_0 = arith.constant 0 : i32
    %2 = arith.cmpi ne, %1, %c0_i32_0 : i32
    scf.if %2 {
      %c0_54 = arith.constant 0 : index
      %c0_55 = arith.constant 0 : index
      %152 = vector.load %arg3[%c0_54, %c0_55] : memref<2x32xf32, #tpu.memory_space<vmem>>, vector<2x32xf32>
      %c0_56 = arith.constant 0 : index
      %c0_57 = arith.constant 0 : index
      %153 = vector.load %arg2[%c0_56, %c0_57] : memref<8x32xf32, #tpu.memory_space<vmem>>, vector<8x32xf32>
      %154 = vector.extract_strided_slice %152 {offsets = [0, 0], sizes = [1, 32], strides = [1, 1]} : vector<2x32xf32> to vector<1x32xf32>
      %155 = vector.extract_strided_slice %152 {offsets = [1, 0], sizes = [1, 32], strides = [1, 1]} : vector<2x32xf32> to vector<1x32xf32>
      %cst_58 = arith.constant dense<0.000000e+00> : vector<8xf32>
      %156 = vector.multi_reduction <add>, %153, %cst_58 [1] : vector<8x32xf32> to vector<8xf32>
      %157 = vector.shape_cast %156 : vector<8xf32> to vector<8x1xf32>
      %cst_59 = arith.constant 3.200000e+01 : f32
      %158 = vector.broadcast %cst_59 : f32 to vector<8x1xf32>
      %159 = arith.divf %157, %158 : vector<8x1xf32>
      %160 = arith.mulf %153, %153 : vector<8x32xf32>
      %cst_60 = arith.constant dense<0.000000e+00> : vector<8xf32>
      %161 = vector.multi_reduction <add>, %160, %cst_60 [1] : vector<8x32xf32> to vector<8xf32>
      %162 = vector.shape_cast %161 : vector<8xf32> to vector<8x1xf32>
      %cst_61 = arith.constant 3.200000e+01 : f32
      %163 = vector.broadcast %cst_61 : f32 to vector<8x1xf32>
      %164 = arith.divf %162, %163 : vector<8x1xf32>
      %165 = arith.mulf %159, %159 : vector<8x1xf32>
      %166 = arith.subf %164, %165 : vector<8x1xf32>
      %167 = vector.broadcast %159 : vector<8x1xf32> to vector<8x32xf32>
      %168 = arith.subf %153, %167 : vector<8x32xf32>
      %cst_62 = arith.constant 9.99999996E-13 : f32
      %169 = vector.broadcast %cst_62 : f32 to vector<8x1xf32>
      %170 = arith.addf %166, %169 : vector<8x1xf32>
      %171 = math.rsqrt %170 : vector<8x1xf32>
      %172 = vector.broadcast %171 : vector<8x1xf32> to vector<8x32xf32>
      %173 = arith.mulf %168, %172 : vector<8x32xf32>
      %174 = vector.broadcast %154 : vector<1x32xf32> to vector<8x32xf32>
      %175 = arith.mulf %173, %174 : vector<8x32xf32>
      %176 = vector.broadcast %155 : vector<1x32xf32> to vector<8x32xf32>
      %177 = arith.addf %175, %176 : vector<8x32xf32>
      %c0_63 = arith.constant 0 : index
      %c0_64 = arith.constant 0 : index
      %178 = vector.load %arg13[%c0_63, %c0_64] : memref<8x32xf32, #tpu.memory_space<vmem>>, vector<8x32xf32>
      tpu.vector_store %arg13[%c0_63, %c0_64], %177 {strides = array<i32>} : memref<8x32xf32, #tpu.memory_space<vmem>>, vector<8x32xf32>,
    } else {
    }
    %c0 = arith.constant 0 : index
    %c0_1 = arith.constant 0 : index
    %3 = vector.load %arg13[%c0, %c0_1] : memref<8x32xf32, #tpu.memory_space<vmem>>, vector<8x32xf32>
    %c0_2 = arith.constant 0 : index
    %c0_3 = arith.constant 0 : index
    %c0_4 = arith.constant 0 : index
    %4 = vector.load %arg5[%c0_2, %c0_3, %c0_4] : memref<1x9x32xf32, #tpu.memory_space<vmem>>, vector<1x9x32xf32>
    %5 = vector.shape_cast %4 : vector<1x9x32xf32> to vector<9x32xf32>
    %6 = vector.extract_strided_slice %5 {offsets = [0, 0], sizes = [1, 32], strides = [1, 1]} : vector<9x32xf32> to vector<1x32xf32>
    %7 = vector.extract_strided_slice %5 {offsets = [1, 0], sizes = [1, 32], strides = [1, 1]} : vector<9x32xf32> to vector<1x32xf32>
    %8 = vector.extract_strided_slice %5 {offsets = [2, 0], sizes = [1, 32], strides = [1, 1]} : vector<9x32xf32> to vector<1x32xf32>
    %9 = vector.extract_strided_slice %5 {offsets = [3, 0], sizes = [1, 32], strides = [1, 1]} : vector<9x32xf32> to vector<1x32xf32>
    %10 = vector.extract_strided_slice %5 {offsets = [4, 0], sizes = [1, 32], strides = [1, 1]} : vector<9x32xf32> to vector<1x32xf32>
    %11 = vector.extract_strided_slice %5 {offsets = [5, 0], sizes = [1, 32], strides = [1, 1]} : vector<9x32xf32> to vector<1x32xf32>
    %12 = vector.extract_strided_slice %5 {offsets = [6, 0], sizes = [1, 32], strides = [1, 1]} : vector<9x32xf32> to vector<1x32xf32>
    %13 = vector.extract_strided_slice %5 {offsets = [7, 0], sizes = [1, 32], strides = [1, 1]} : vector<9x32xf32> to vector<1x32xf32>
    %14 = vector.extract_strided_slice %5 {offsets = [8, 0], sizes = [1, 32], strides = [1, 1]} : vector<9x32xf32> to vector<1x32xf32>
    %15 = arith.truncf %3 : vector<8x32xf32> to vector<8x32xbf16>
    %c0_5 = arith.constant 0 : index
    %c0_6 = arith.constant 0 : index
    %c0_7 = arith.constant 0 : index
    %c0_8 = arith.constant 0 : index
    %16 = vector.load %arg4[%c0_5, %c0_6, %c0_7, %c0_8] : memref<1x3x32x32xbf16, #tpu.memory_space<vmem>>, vector<1x1x32x32xbf16>
    %17 = vector.shape_cast %16 : vector<1x1x32x32xbf16> to vector<32x32xbf16>
    %cst = arith.constant dense<0.000000e+00> : vector<8x32xf32>
    %18 = tpu.matmul %15, %17, %cst {dimension_numbers = #tpu.dot_dimension_numbers<[1], [0], [0], [1], [0, 0, 1, 1], [], []>} : vector<8x32xbf16>, vector<32x32xbf16>, vector<8x32xf32> -> vector<8x32xf32>
    %19 = vector.broadcast %6 : vector<1x32xf32> to vector<8x32xf32>
    %20 = arith.addf %18, %19 : vector<8x32xf32>
    %c0_9 = arith.constant 0 : index
    %c1 = arith.constant 1 : index
    %c0_10 = arith.constant 0 : index
    %c0_11 = arith.constant 0 : index
    %21 = vector.load %arg4[%c0_9, %c1, %c0_10, %c0_11] : memref<1x3x32x32xbf16, #tpu.memory_space<vmem>>, vector<1x1x32x32xbf16>
    %22 = vector.shape_cast %21 : vector<1x1x32x32xbf16> to vector<32x32xbf16>
    %cst_12 = arith.constant dense<0.000000e+00> : vector<8x32xf32>
    %23 = tpu.matmul %15, %22, %cst_12 {dimension_numbers = #tpu.dot_dimension_numbers<[1], [0], [0], [1], [0, 0, 1, 1], [], []>} : vector<8x32xbf16>, vector<32x32xbf16>, vector<8x32xf32> -> vector<8x32xf32>
    %24 = vector.broadcast %7 : vector<1x32xf32> to vector<8x32xf32>
    %25 = arith.addf %23, %24 : vector<8x32xf32>
    %c0_13 = arith.constant 0 : index
    %c2 = arith.constant 2 : index
    %c0_14 = arith.constant 0 : index
    %c0_15 = arith.constant 0 : index
    %26 = vector.load %arg4[%c0_13, %c2, %c0_14, %c0_15] : memref<1x3x32x32xbf16, #tpu.memory_space<vmem>>, vector<1x1x32x32xbf16>
    %27 = vector.shape_cast %26 : vector<1x1x32x32xbf16> to vector<32x32xbf16>
    %cst_16 = arith.constant dense<0.000000e+00> : vector<8x32xf32>
    %28 = tpu.matmul %15, %27, %cst_16 {dimension_numbers = #tpu.dot_dimension_numbers<[1], [0], [0], [1], [0, 0, 1, 1], [], []>} : vector<8x32xbf16>, vector<32x32xbf16>, vector<8x32xf32> -> vector<8x32xf32>
    %29 = vector.broadcast %8 : vector<1x32xf32> to vector<8x32xf32>
    %30 = arith.addf %28, %29 : vector<8x32xf32>
    %31 = vector.extract_strided_slice %20 {offsets = [0, 0], sizes = [8, 16], strides = [1, 1]} : vector<8x32xf32> to vector<8x16xf32>
    %32 = vector.extract_strided_slice %20 {offsets = [0, 16], sizes = [8, 16], strides = [1, 1]} : vector<8x32xf32> to vector<8x16xf32>
    %33 = vector.shape_cast %31 : vector<8x16xf32> to vector<1x8x16xf32>
    %34 = vector.shape_cast %32 : vector<8x16xf32> to vector<1x8x16xf32>
    %35 = tpu.concatenate %33, %34 in 0 : vector<1x8x16xf32>, vector<1x8x16xf32> -> vector<2x8x16xf32>
    %36 = arith.truncf %35 : vector<2x8x16xf32> to vector<2x8x16xbf16>
    %37 = vector.extract_strided_slice %25 {offsets = [0, 0], sizes = [8, 16], strides = [1, 1]} : vector<8x32xf32> to vector<8x16xf32>
    %38 = vector.extract_strided_slice %25 {offsets = [0, 16], sizes = [8, 16], strides = [1, 1]} : vector<8x32xf32> to vector<8x16xf32>
    %39 = vector.shape_cast %37 : vector<8x16xf32> to vector<1x8x16xf32>
    %40 = vector.shape_cast %38 : vector<8x16xf32> to vector<1x8x16xf32>
    %41 = tpu.concatenate %39, %40 in 0 : vector<1x8x16xf32>, vector<1x8x16xf32> -> vector<2x8x16xf32>
    %42 = arith.truncf %41 : vector<2x8x16xf32> to vector<2x8x16xbf16>
    %43 = vector.extract_strided_slice %30 {offsets = [0, 0], sizes = [8, 16], strides = [1, 1]} : vector<8x32xf32> to vector<8x16xf32>
    %44 = vector.extract_strided_slice %30 {offsets = [0, 16], sizes = [8, 16], strides = [1, 1]} : vector<8x32xf32> to vector<8x16xf32>
    %45 = vector.shape_cast %43 : vector<8x16xf32> to vector<1x8x16xf32>
    %46 = vector.shape_cast %44 : vector<8x16xf32> to vector<1x8x16xf32>
    %47 = tpu.concatenate %45, %46 in 0 : vector<1x8x16xf32>, vector<1x8x16xf32> -> vector<2x8x16xf32>
    %48 = arith.truncf %47 : vector<2x8x16xf32> to vector<2x8x16xbf16>
    "tpu.trace_start"() <{level = 10 : i32, message = "hqd,hkd->hqk"}> : () -> ()
    %cst_17 = arith.constant dense<0.000000e+00> : vector<2x8x8xf32>
    %49 = tpu.matmul %36, %42, %cst_17 {dimension_numbers = #tpu.dot_dimension_numbers<[2], [2], [1], [1], [0, 0, 0, 1, 1, 1], [0], [0]>} : vector<2x8x16xbf16>, vector<2x8x16xbf16>, vector<2x8x8xf32> -> vector<2x8x8xf32>
    "tpu.trace_stop"() : () -> ()
    %cst_18 = arith.constant 2.500000e-01 : f32
    %50 = vector.broadcast %cst_18 : f32 to vector<2x8x8xf32>
    %51 = arith.mulf %49, %50 : vector<2x8x8xf32>
    %cst_19 = arith.constant dense<0xFF800000> : vector<2x8xf32>
    %52 = vector.multi_reduction <maximumf>, %51, %cst_19 [2] : vector<2x8x8xf32> to vector<2x8xf32>
    %53 = vector.shape_cast %52 : vector<2x8xf32> to vector<2x8x1xf32>
    %54 = vector.broadcast %53 : vector<2x8x1xf32> to vector<2x8x8xf32>
    %55 = arith.subf %51, %54 : vector<2x8x8xf32>
    %56 = math.exp %55 : vector<2x8x8xf32>
    %cst_20 = arith.constant dense<0.000000e+00> : vector<2x8xf32>
    %57 = vector.multi_reduction <add>, %56, %cst_20 [2] : vector<2x8x8xf32> to vector<2x8xf32>
    %58 = vector.shape_cast %57 : vector<2x8xf32> to vector<2x8x1xf32>
    %59 = tpu.reciprocal %58 {approx = true} : vector<2x8x1xf32> -> vector<2x8x1xf32>
    %60 = vector.broadcast %59 : vector<2x8x1xf32> to vector<2x8x8xf32>
    %61 = arith.mulf %56, %60 : vector<2x8x8xf32>
    %62 = arith.truncf %61 : vector<2x8x8xf32> to vector<2x8x8xbf16>
    "tpu.trace_start"() <{level = 10 : i32, message = "hqk,hkd->hqd"}> : () -> ()
    %cst_21 = arith.constant dense<0.000000e+00> : vector<2x8x16xf32>
    %63 = tpu.matmul %62, %48, %cst_21 {dimension_numbers = #tpu.dot_dimension_numbers<[2], [1], [1], [2], [0, 0, 0, 1, 1, 2], [0], [0]>} : vector<2x8x8xbf16>, vector<2x8x16xbf16>, vector<2x8x16xf32> -> vector<2x8x16xf32>
    "tpu.trace_stop"() : () -> ()
    %64 = vector.extract_strided_slice %63 {offsets = [0, 0, 0], sizes = [1, 8, 16], strides = [1, 1, 1]} : vector<2x8x16xf32> to vector<1x8x16xf32>
    %65 = vector.shape_cast %64 : vector<1x8x16xf32> to vector<8x16xf32>
    %66 = vector.extract_strided_slice %63 {offsets = [1, 0, 0], sizes = [1, 8, 16], strides = [1, 1, 1]} : vector<2x8x16xf32> to vector<1x8x16xf32>
    %67 = vector.shape_cast %66 : vector<1x8x16xf32> to vector<8x16xf32>
    %68 = tpu.concatenate %65, %67 in 1 : vector<8x16xf32>, vector<8x16xf32> -> vector<8x32xf32>
    %69 = arith.truncf %68 : vector<8x32xf32> to vector<8x32xbf16>
    %c0_22 = arith.constant 0 : index
    %c0_23 = arith.constant 0 : index
    %c0_24 = arith.constant 0 : index
    %70 = vector.load %arg6[%c0_22, %c0_23, %c0_24] : memref<1x32x32xbf16, #tpu.memory_space<vmem>>, vector<1x32x32xbf16>
    %71 = vector.shape_cast %70 : vector<1x32x32xbf16> to vector<32x32xbf16>
    %cst_25 = arith.constant dense<0.000000e+00> : vector<8x32xf32>
    %72 = tpu.matmul %69, %71, %cst_25 {dimension_numbers = #tpu.dot_dimension_numbers<[1], [0], [0], [1], [0, 0, 1, 1], [], []>} : vector<8x32xbf16>, vector<32x32xbf16>, vector<8x32xf32> -> vector<8x32xf32>
    %73 = vector.broadcast %9 : vector<1x32xf32> to vector<8x32xf32>
    %74 = arith.addf %72, %73 : vector<8x32xf32>
    %75 = arith.addf %3, %74 : vector<8x32xf32>
    %cst_26 = arith.constant dense<0.000000e+00> : vector<8xf32>
    %76 = vector.multi_reduction <add>, %75, %cst_26 [1] : vector<8x32xf32> to vector<8xf32>
    %77 = vector.shape_cast %76 : vector<8xf32> to vector<8x1xf32>
    %cst_27 = arith.constant 3.200000e+01 : f32
    %78 = vector.broadcast %cst_27 : f32 to vector<8x1xf32>
    %79 = arith.divf %77, %78 : vector<8x1xf32>
    %80 = arith.mulf %75, %75 : vector<8x32xf32>
    %cst_28 = arith.constant dense<0.000000e+00> : vector<8xf32>
    %81 = vector.multi_reduction <add>, %80, %cst_28 [1] : vector<8x32xf32> to vector<8xf32>
    %82 = vector.shape_cast %81 : vector<8xf32> to vector<8x1xf32>
    %cst_29 = arith.constant 3.200000e+01 : f32
    %83 = vector.broadcast %cst_29 : f32 to vector<8x1xf32>
    %84 = arith.divf %82, %83 : vector<8x1xf32>
    %85 = arith.mulf %79, %79 : vector<8x1xf32>
    %86 = arith.subf %84, %85 : vector<8x1xf32>
    %87 = vector.broadcast %79 : vector<8x1xf32> to vector<8x32xf32>
    %88 = arith.subf %75, %87 : vector<8x32xf32>
    %cst_30 = arith.constant 9.99999996E-13 : f32
    %89 = vector.broadcast %cst_30 : f32 to vector<8x1xf32>
    %90 = arith.addf %86, %89 : vector<8x1xf32>
    %91 = math.rsqrt %90 : vector<8x1xf32>
    %92 = vector.broadcast %91 : vector<8x1xf32> to vector<8x32xf32>
    %93 = arith.mulf %88, %92 : vector<8x32xf32>
    %94 = vector.broadcast %10 : vector<1x32xf32> to vector<8x32xf32>
    %95 = arith.mulf %93, %94 : vector<8x32xf32>
    %96 = vector.broadcast %11 : vector<1x32xf32> to vector<8x32xf32>
    %97 = arith.addf %95, %96 : vector<8x32xf32>
    %98 = arith.truncf %97 : vector<8x32xf32> to vector<8x32xbf16>
    %c0_31 = arith.constant 0 : index
    %c0_32 = arith.constant 0 : index
    %c0_33 = arith.constant 0 : index
    %99 = vector.load %arg7[%c0_31, %c0_32, %c0_33] : memref<1x32x64xbf16, #tpu.memory_space<vmem>>, vector<1x32x64xbf16>
    %100 = vector.shape_cast %99 : vector<1x32x64xbf16> to vector<32x64xbf16>
    %cst_34 = arith.constant dense<0.000000e+00> : vector<8x64xf32>
    %101 = tpu.matmul %98, %100, %cst_34 {dimension_numbers = #tpu.dot_dimension_numbers<[1], [0], [0], [1], [0, 0, 1, 1], [], []>} : vector<8x32xbf16>, vector<32x64xbf16>, vector<8x64xf32> -> vector<8x64xf32>
    %c0_35 = arith.constant 0 : index
    %c0_36 = arith.constant 0 : index
    %c0_37 = arith.constant 0 : index
    %102 = vector.load %arg8[%c0_35, %c0_36, %c0_37] : memref<1x1x64xf32, #tpu.memory_space<vmem>>, vector<1x1x64xf32>
    %103 = vector.shape_cast %102 : vector<1x1x64xf32> to vector<1x64xf32>
    %104 = vector.broadcast %103 : vector<1x64xf32> to vector<8x64xf32>
    %105 = arith.addf %101, %104 : vector<8x64xf32>
    %cst_38 = arith.constant 5.000000e-01 : f32
    %106 = vector.broadcast %cst_38 : f32 to vector<8x64xf32>
    %107 = arith.mulf %106, %105 : vector<8x64xf32>
    %cst_39 = arith.constant 4.471500e-02 : f32
    %108 = vector.broadcast %cst_39 : f32 to vector<8x64xf32>
    %109 = arith.mulf %108, %105 : vector<8x64xf32>
    %110 = arith.mulf %109, %105 : vector<8x64xf32>
    %111 = arith.mulf %110, %105 : vector<8x64xf32>
    %112 = arith.addf %105, %111 : vector<8x64xf32>
    %cst_40 = arith.constant 0.797884583 : f32
    %113 = vector.broadcast %cst_40 : f32 to vector<8x64xf32>
    %114 = arith.mulf %113, %112 : vector<8x64xf32>
    %115 = math.tanh %114 : vector<8x64xf32>
    %cst_41 = arith.constant 1.000000e+00 : f32
    %116 = vector.broadcast %cst_41 : f32 to vector<8x64xf32>
    %117 = arith.addf %116, %115 : vector<8x64xf32>
    %118 = arith.mulf %107, %117 : vector<8x64xf32>
    %119 = arith.truncf %118 : vector<8x64xf32> to vector<8x64xbf16>
    %c0_42 = arith.constant 0 : index
    %c0_43 = arith.constant 0 : index
    %c0_44 = arith.constant 0 : index
    %120 = vector.load %arg9[%c0_42, %c0_43, %c0_44] : memref<1x64x32xbf16, #tpu.memory_space<vmem>>, vector<1x64x32xbf16>
    %121 = vector.shape_cast %120 : vector<1x64x32xbf16> to vector<64x32xbf16>
    %cst_45 = arith.constant dense<0.000000e+00> : vector<8x32xf32>
    %122 = tpu.matmul %119, %121, %cst_45 {dimension_numbers = #tpu.dot_dimension_numbers<[1], [0], [0], [1], [0, 0, 1, 1], [], []>} : vector<8x64xbf16>, vector<64x32xbf16>, vector<8x32xf32> -> vector<8x32xf32>
    %123 = vector.broadcast %12 : vector<1x32xf32> to vector<8x32xf32>
    %124 = arith.addf %122, %123 : vector<8x32xf32>
    %125 = arith.addf %97, %124 : vector<8x32xf32>
    %cst_46 = arith.constant dense<0.000000e+00> : vector<8xf32>
    %126 = vector.multi_reduction <add>, %125, %cst_46 [1] : vector<8x32xf32> to vector<8xf32>
    %127 = vector.shape_cast %126 : vector<8xf32> to vector<8x1xf32>
    %cst_47 = arith.constant 3.200000e+01 : f32
    %128 = vector.broadcast %cst_47 : f32 to vector<8x1xf32>
    %129 = arith.divf %127, %128 : vector<8x1xf32>
    %130 = arith.mulf %125, %125 : vector<8x32xf32>
    %cst_48 = arith.constant dense<0.000000e+00> : vector<8xf32>
    %131 = vector.multi_reduction <add>, %130, %cst_48 [1] : vector<8x32xf32> to vector<8xf32>
    %132 = vector.shape_cast %131 : vector<8xf32> to vector<8x1xf32>
    %cst_49 = arith.constant 3.200000e+01 : f32
    %133 = vector.broadcast %cst_49 : f32 to vector<8x1xf32>
    %134 = arith.divf %132, %133 : vector<8x1xf32>
    %135 = arith.mulf %129, %129 : vector<8x1xf32>
    %136 = arith.subf %134, %135 : vector<8x1xf32>
    %137 = vector.broadcast %129 : vector<8x1xf32> to vector<8x32xf32>
    %138 = arith.subf %125, %137 : vector<8x32xf32>
    %cst_50 = arith.constant 9.99999996E-13 : f32
    %139 = vector.broadcast %cst_50 : f32 to vector<8x1xf32>
    %140 = arith.addf %136, %139 : vector<8x1xf32>
    %141 = math.rsqrt %140 : vector<8x1xf32>
    %142 = vector.broadcast %141 : vector<8x1xf32> to vector<8x32xf32>
    %143 = arith.mulf %138, %142 : vector<8x32xf32>
    %144 = vector.broadcast %13 : vector<1x32xf32> to vector<8x32xf32>
    %145 = arith.mulf %143, %144 : vector<8x32xf32>
    %146 = vector.broadcast %14 : vector<1x32xf32> to vector<8x32xf32>
    %147 = arith.addf %145, %146 : vector<8x32xf32>
    %c0_51 = arith.constant 0 : index
    %c0_52 = arith.constant 0 : index
    %148 = vector.load %arg13[%c0_51, %c0_52] : memref<8x32xf32, #tpu.memory_space<vmem>>, vector<8x32xf32>
    tpu.vector_store %arg13[%c0_51, %c0_52], %147 {strides = array<i32>} : memref<8x32xf32, #tpu.memory_space<vmem>>, vector<8x32xf32>,
    %c1_i32 = arith.constant 1 : i32
    %149 = arith.cmpi eq, %arg1, %c1_i32 : i32
    %150 = arith.extui %149 : i1 to i32
    %c0_i32_53 = arith.constant 0 : i32
    %151 = arith.cmpi ne, %150, %c0_i32_53 : i32
    scf.if %151 {
      %152 = arith.truncf %147 : vector<8x32xf32> to vector<8x32xbf16>
      %c0_54 = arith.constant 0 : index
      %c0_55 = arith.constant 0 : index
      %153 = vector.load %arg10[%c0_54, %c0_55] : memref<32x128xbf16, #tpu.memory_space<vmem>>, vector<32x128xbf16>
      %cst_56 = arith.constant dense<0.000000e+00> : vector<8x128xf32>
      %154 = tpu.matmul %152, %153, %cst_56 {dimension_numbers = #tpu.dot_dimension_numbers<[1], [0], [0], [1], [0, 0, 1, 1], [], []>} : vector<8x32xbf16>, vector<32x128xbf16>, vector<8x128xf32> -> vector<8x128xf32>
      %c0_57 = arith.constant 0 : index
      %c0_58 = arith.constant 0 : index
      %155 = vector.load %arg11[%c0_57, %c0_58] : memref<1x128xf32, #tpu.memory_space<vmem>>, vector<1x128xf32>
      %156 = vector.broadcast %155 : vector<1x128xf32> to vector<8x128xf32>
      %157 = arith.addf %154, %156 : vector<8x128xf32>
      %c0_59 = arith.constant 0 : index
      %c0_60 = arith.constant 0 : index
      %158 = vector.load %arg12[%c0_59, %c0_60] : memref<8x128xf32, #tpu.memory_space<vmem>>, vector<8x128xf32>
      tpu.vector_store %arg12[%c0_59, %c0_60], %157 {strides = array<i32>} : memref<8x128xf32, #tpu.memory_space<vmem>>, vector<8x128xf32>,
    } else {
    }
    return
  }
  func.func @transform_0(%arg0: i32, %arg1: i32) -> (i32, i32) {
    %c0_i32 = arith.constant 0 : i32
    %c0_i32_0 = arith.constant 0 : i32
    return %arg0, %c0_i32 : i32, i32
  }
  func.func @transform_1(%arg0: i32, %arg1: i32) -> (i32, i32) {
    %c0_i32 = arith.constant 0 : i32
    %c0_i32_0 = arith.constant 0 : i32
    %c0_i32_1 = arith.constant 0 : i32
    return %c0_i32, %c0_i32_0 : i32, i32
  }
  func.func @transform_2(%arg0: i32, %arg1: i32) -> (i32, i32, i32, i32) {
    %c0_i32 = arith.constant 0 : i32
    %c0_i32_0 = arith.constant 0 : i32
    %c0_i32_1 = arith.constant 0 : i32
    %c0_i32_2 = arith.constant 0 : i32
    return %arg1, %c0_i32, %c0_i32_0, %c0_i32_1 : i32, i32, i32, i32
  }
  func.func @transform_3(%arg0: i32, %arg1: i32) -> (i32, i32, i32) {
    %c0_i32 = arith.constant 0 : i32
    %c0_i32_0 = arith.constant 0 : i32
    %c0_i32_1 = arith.constant 0 : i32
    return %arg1, %c0_i32, %c0_i32_0 : i32, i32, i32
  }
  func.func @transform_4(%arg0: i32, %arg1: i32) -> (i32, i32, i32) {
    %c0_i32 = arith.constant 0 : i32
    %c0_i32_0 = arith.constant 0 : i32
    %c0_i32_1 = arith.constant 0 : i32
    return %arg1, %c0_i32, %c0_i32_0 : i32, i32, i32
  }
  func.func @transform_5(%arg0: i32, %arg1: i32) -> (i32, i32, i32) {
    %c0_i32 = arith.constant 0 : i32
    %c0_i32_0 = arith.constant 0 : i32
    %c0_i32_1 = arith.constant 0 : i32
    return %arg1, %c0_i32, %c0_i32_0 : i32, i32, i32
  }
  func.func @transform_6(%arg0: i32, %arg1: i32) -> (i32, i32, i32) {
    %c0_i32 = arith.constant 0 : i32
    %c0_i32_0 = arith.constant 0 : i32
    %c0_i32_1 = arith.constant 0 : i32
    return %arg1, %c0_i32, %c0_i32_0 : i32, i32, i32
  }
  func.func @transform_7(%arg0: i32, %arg1: i32) -> (i32, i32, i32) {
    %c0_i32 = arith.constant 0 : i32
    %c0_i32_0 = arith.constant 0 : i32
    %c0_i32_1 = arith.constant 0 : i32
    return %arg1, %c0_i32, %c0_i32_0 : i32, i32, i32
  }
  func.func @transform_8(%arg0: i32, %arg1: i32) -> (i32, i32) {
    %c0_i32 = arith.constant 0 : i32
    %c0_i32_0 = arith.constant 0 : i32
    %c0_i32_1 = arith.constant 0 : i32
    return %c0_i32, %c0_i32_0 : i32, i32
  }
  func.func @transform_9(%arg0: i32, %arg1: i32) -> (i32, i32) {
    %c0_i32 = arith.constant 0 : i32
    %c0_i32_0 = arith.constant 0 : i32
    %c0_i32_1 = arith.constant 0 : i32
    return %c0_i32, %c0_i32_0 : i32, i32
  }
  func.func @transform_10(%arg0: i32, %arg1: i32) -> (i32, i32) {
    %c0_i32 = arith.constant 0 : i32
    %c0_i32_0 = arith.constant 0 : i32
    return %arg0, %c0_i32 : i32, i32
  }
}

</mosaic_0001>

<llo_original>
// kernel: tpu_custom_call.1
$region0: #{tpu_custom_call.1}
  #allocation0 [shape = 'u32[]', space=smem, size = 0x4, offset = 0x4, fixed_abs, tag = 'smem constant byte address 0x4 - core index']
  #allocation1 [shape = 'u32[72,128]{1,0:T(1,128)}', space=vmem, size = 0x9000, scoped, tag = 'internal scratch']
  #allocation2 [shape = 'f32[8,32]{1,0:T(8,128)}', space=vmem, size = 0x1000, scoped, tag = 'scratch operand']
  %s0 = inlined_call_operand.vmem [shape: f32[16,32], index: 0, kind: input, shape index: {}]
  %s1 = inlined_call_operand.vmem [shape: f32[2,32], index: 1, kind: input, shape index: {}]
  %s2 = inlined_call_operand.vmem [shape: bf16[2,3,32,32], index: 2, kind: input, shape index: {}]
  %s3 = inlined_call_operand.vmem [shape: f32[2,9,32], index: 3, kind: input, shape index: {}]
  %s4 = inlined_call_operand.hbm [shape: bf16[2,32,32], index: 4, kind: input, shape index: {}]
  %s5 = inlined_call_operand.hbm [shape: bf16[2,32,64], index: 5, kind: input, shape index: {}]
  %s6 = inlined_call_operand.vmem [shape: f32[2,1,64], index: 6, kind: input, shape index: {}]
  %s7 = inlined_call_operand.vmem [shape: bf16[2,64,32], index: 7, kind: input, shape index: {}]
  %s8 = inlined_call_operand.hbm [shape: bf16[32,128], index: 8, kind: input, shape index: {}]
  %s9 = inlined_call_operand.vmem [shape: f32[1,128], index: 9, kind: input, shape index: {}]
  %s10 = inlined_call_operand.hbm [shape: f32[16,128], index: 10, kind: output, shape index: {}]
  %s11 = sld [smem:[#allocation0]]
  $region93: #{tpu_custom_call.1} parent=0
    _
  %s13 = ssub.s32 1, %s11
  %s14 = scalar_select 0, %s13, %s11
  $region1: #{tpu_custom_call.1} parent=0
    #allocation3 [shape = 'u8[16384]{0}', space=vmem, size = 0x4000, scoped, tag = 'input window, operand 4']
    #allocation4 [shape = 's32[2]{0}', space=sflag, size = 0x8, scoped, tag = 'scoped memory for tpu_custom_call.1']
    #allocation5 [shape = 's32[2]{0}', space=sflag, size = 0x8, scoped, tag = 'scoped memory for tpu_custom_call.1']
    #allocation6 [shape = 'u8[16384]{0}', space=vmem, size = 0x4000, scoped, tag = 'input window, operand 5']
    #allocation7 [shape = 's32[2]{0}', space=sflag, size = 0x8, scoped, tag = 'scoped memory for tpu_custom_call.1']
    #allocation8 [shape = 'u8[8192]{0}', space=vmem, size = 0x2000, scoped, tag = 'input window, operand 8, single buffered']
    #allocation9 [shape = 'u8[8192]{0}', space=vmem, size = 0x2000, scoped, tag = 'output window, operand 0']
    %15 = vsyncpa [#allocation4], 0
    %s16 = scalar_lea.sflag [#allocation4], 1
    %17 = vsyncpa %s16, 0
    %18 = vsyncpa [#allocation7], 0
    %s19 = scalar_lea.sflag [#allocation7], 1
    %20 = vsyncpa %s19, 0
    %21 = vsyncpa [#allocation5], 0
    %s22 = scalar_lea.sflag [#allocation5], 1
    %23 = vsyncpa %s22, 0
    loop: start=0, step=1, limit=6
    $region2: #{tpu_custom_call.1} parent=1 // loop_pre_header
      _
    $region3: #{tpu_custom_call.1} parent=1 // loop_header
      %s25 = sphi 0, %s29
      %p26 = scmp.ge.s32.totalorder %s25, 6
      %s32 = sphi 0, %s44
      %s33 = sphi 0, %s40
      %s34 = sphi 0, %s32
      %s35 = sphi 0, %s33
      %s36 = sphi 0, %s34
      %s37 = sphi 0, %s35
      %s47 = sphi 0, %s49
      %s50 = sphi 0, %s47
      %s51 = sphi 0, %s50
      %s67 = sphi 0, %s51
      %s71 = sphi 0, %s71
      %s73 = sphi 0, %s71
      %s74 = sphi 0, %s73
      %s88 = sphi 0, %s74
      %s94 = sphi 0, %s96
      %s97 = sphi 0, %s94
      %s98 = sphi 0, %s97
      %s114 = sphi 0, %s98
      %s120 = sphi 0, %s122
      %s123 = sphi 0, %s120
      %s124 = sphi 0, %s123
      %s140 = sphi 0, %s124
      %s146 = sphi 0, %s148
      %s149 = sphi 0, %s146
      %s150 = sphi 0, %s149
      %s166 = sphi 0, %s150
      %s172 = sphi 0, %s174
      %s175 = sphi 0, %s172
      %s176 = sphi 0, %s175
      %s192 = sphi 0, %s176
      %s198 = sphi 0, %s200
      %s201 = sphi 0, %s198
      %s202 = sphi 0, %s201
      %s218 = sphi 0, %s202
      %s224 = sphi 0, %s226
      %s227 = sphi 0, %s224
      %s228 = sphi 0, %s227
      %s244 = sphi 0, %s228
      %s248 = sphi 0, %s248
      %s250 = sphi 0, %s248
      %s251 = sphi 0, %s250
      %s265 = sphi 0, %s251
      %s269 = sphi 0, %s269
      %s271 = sphi 0, %s269
      %s272 = sphi 0, %s271
      %s286 = sphi 0, %s272
      %s292 = sphi 0, %s294
      %s295 = sphi 0, %s292
      %s296 = sphi 0, %s295
      %s312 = sphi 0, %s296
    $region4: #{tpu_custom_call.1} parent=1 // loop_header_branch
      %28 = sbr.rel (%p26) target = $region8
    $region5: #{tpu_custom_call.1} parent=1 // loop_body
      %s30 = ssub.s32 %s25, 1
      %s31 = ssub.s32 %s25, 2
      %s38 = sadd.s32 1, %s33
      %p39 = scmp.ge.s32.totalorder %s38, 2
      %s40 = scalar_select %p39, 0, %s38
      %s41 = sadd.s32 1, %s32
      %s42 = scalar_select %p39, %s41, %s32
      %p43 = scmp.ge.s32.totalorder %s42, 2
      %s44 = scalar_select %p43, 0, %s42
      %s45 = ssub.s32 %s32, %s44
      %p46 = scmp.eq.s32.totalorder %s45, 0
      %s48 = sadd.s32 %s47, 1
      %s49 = scalar_select %p46, %s47, %s48
      %p52 = pneg %p46
      %p53 = scmp.eq.s32.totalorder %s25, 3
      %p54 = por %p52, %p53
      %p55 = scmp.ne.s32.totalorder %s47, %s50
      %p56 = scmp.eq.s32.totalorder %s25, 0
      %p57 = por %p55, %p56
      %p58 = scmp.ne.s32.totalorder %s47, %s50
      %p59 = scmp.eq.s32.totalorder %s30, 3
      %p60 = por %p58, %p59
      %p61 = scmp.ne.s32.totalorder %s50, %s51
      %p62 = scmp.eq.s32.totalorder %s30, 0
      %p63 = por %p61, %p62
      %p64 = scmp.ne.s32.totalorder %s50, %s51
      %p65 = scmp.eq.s32.totalorder %s31, 3
      %p66 = por %p64, %p65
      %p68 = scmp.ne.s32.totalorder %s51, %s67
      %p69 = scmp.eq.s32.totalorder %s31, 0
      %p70 = por %p68, %p69
      %s72 = sadd.s32 %s71, 1
      %p75 = scmp.eq.s32.totalorder %s25, 3
      %p76 = scmp.ne.s32.totalorder %s71, %s73
      %p77 = scmp.eq.s32.totalorder %s25, 0
      %p78 = por %p76, %p77
      %p79 = scmp.ne.s32.totalorder %s71, %s73
      %p80 = scmp.eq.s32.totalorder %s30, 3
      %p81 = por %p79, %p80
      %p82 = scmp.ne.s32.totalorder %s73, %s74
      %p83 = scmp.eq.s32.totalorder %s30, 0
      %p84 = por %p82, %p83
      %p85 = scmp.ne.s32.totalorder %s73, %s74
      %p86 = scmp.eq.s32.totalorder %s31, 3
      %p87 = por %p85, %p86
      %p89 = scmp.ne.s32.totalorder %s74, %s88
      %p90 = scmp.eq.s32.totalorder %s31, 0
      %p91 = por %p89, %p90
      %s92 = ssub.s32 %s33, %s40
      %p93 = scmp.eq.s32.totalorder %s92, 0
      %s95 = sadd.s32 %s94, 1
      %s96 = scalar_select %p93, %s94, %s95
      %p99 = pneg %p93
      %p100 = scmp.eq.s32.totalorder %s25, 3
      %p101 = por %p99, %p100
      %p102 = scmp.ne.s32.totalorder %s94, %s97
      %p103 = scmp.eq.s32.totalorder %s25, 0
      %p104 = por %p102, %p103
      %p105 = scmp.ne.s32.totalorder %s94, %s97
      %p106 = scmp.eq.s32.totalorder %s30, 3
      %p107 = por %p105, %p106
      %p108 = scmp.ne.s32.totalorder %s97, %s98
      %p109 = scmp.eq.s32.totalorder %s30, 0
      %p110 = por %p108, %p109
      %p111 = scmp.ne.s32.totalorder %s97, %s98
      %p112 = scmp.eq.s32.totalorder %s31, 3
      %p113 = por %p111, %p112
      %p115 = scmp.ne.s32.totalorder %s98, %s114
      %p116 = scmp.eq.s32.totalorder %s31, 0
      %p117 = por %p115, %p116
      %s118 = ssub.s32 %s33, %s40
      %p119 = scmp.eq.s32.totalorder %s118, 0
      %s121 = sadd.s32 %s120, 1
      %s122 = scalar_select %p119, %s120, %s121
      %p125 = pneg %p119
      %p126 = scmp.eq.s32.totalorder %s25, 3
      %p127 = por %p125, %p126
      %p128 = scmp.ne.s32.totalorder %s120, %s123
      %p129 = scmp.eq.s32.totalorder %s25, 0
      %p130 = por %p128, %p129
      %p131 = scmp.ne.s32.totalorder %s120, %s123
      %p132 = scmp.eq.s32.totalorder %s30, 3
      %p133 = por %p131, %p132
      %p134 = scmp.ne.s32.totalorder %s123, %s124
      %p135 = scmp.eq.s32.totalorder %s30, 0
      %p136 = por %p134, %p135
      %p137 = scmp.ne.s32.totalorder %s123, %s124
      %p138 = scmp.eq.s32.totalorder %s31, 3
      %p139 = por %p137, %p138
      %p141 = scmp.ne.s32.totalorder %s124, %s140
      %p142 = scmp.eq.s32.totalorder %s31, 0
      %p143 = por %p141, %p142
      %s144 = ssub.s32 %s33, %s40
      %p145 = scmp.eq.s32.totalorder %s144, 0
      %s147 = sadd.s32 %s146, 1
      %s148 = scalar_select %p145, %s146, %s147
      %p151 = pneg %p145
      %p152 = scmp.eq.s32.totalorder %s25, 3
      %p153 = por %p151, %p152
      %p154 = scmp.ne.s32.totalorder %s146, %s149
      %p155 = scmp.eq.s32.totalorder %s25, 0
      %p156 = por %p154, %p155
      %p157 = scmp.ne.s32.totalorder %s146, %s149
      %p158 = scmp.eq.s32.totalorder %s30, 3
      %p159 = por %p157, %p158
      %p160 = scmp.ne.s32.totalorder %s149, %s150
      %p161 = scmp.eq.s32.totalorder %s30, 0
      %p162 = por %p160, %p161
      %p163 = scmp.ne.s32.totalorder %s149, %s150
      %p164 = scmp.eq.s32.totalorder %s31, 3
      %p165 = por %p163, %p164
      %p167 = scmp.ne.s32.totalorder %s150, %s166
      %p168 = scmp.eq.s32.totalorder %s31, 0
      %p169 = por %p167, %p168
      %s170 = ssub.s32 %s33, %s40
      %p171 = scmp.eq.s32.totalorder %s170, 0
      %s173 = sadd.s32 %s172, 1
      %s174 = scalar_select %p171, %s172, %s173
      %p177 = pneg %p171
      %p178 = scmp.eq.s32.totalorder %s25, 3
      %p179 = por %p177, %p178
      %p180 = scmp.ne.s32.totalorder %s172, %s175
      %p181 = scmp.eq.s32.totalorder %s25, 0
      %p182 = por %p180, %p181
      %p183 = scmp.ne.s32.totalorder %s172, %s175
      %p184 = scmp.eq.s32.totalorder %s30, 3
      %p185 = por %p183, %p184
      %p186 = scmp.ne.s32.totalorder %s175, %s176
      %p187 = scmp.eq.s32.totalorder %s30, 0
      %p188 = por %p186, %p187
      %p189 = scmp.ne.s32.totalorder %s175, %s176
      %p190 = scmp.eq.s32.totalorder %s31, 3
      %p191 = por %p189, %p190
      %p193 = scmp.ne.s32.totalorder %s176, %s192
      %p194 = scmp.eq.s32.totalorder %s31, 0
      %p195 = por %p193, %p194
      %s196 = ssub.s32 %s33, %s40
      %p197 = scmp.eq.s32.totalorder %s196, 0
      %s199 = sadd.s32 %s198, 1
      %s200 = scalar_select %p197, %s198, %s199
      %p203 = pneg %p197
      %p204 = scmp.eq.s32.totalorder %s25, 3
      %p205 = por %p203, %p204
      %p206 = scmp.ne.s32.totalorder %s198, %s201
      %p207 = scmp.eq.s32.totalorder %s25, 0
      %p208 = por %p206, %p207
      %p209 = scmp.ne.s32.totalorder %s198, %s201
      %p210 = scmp.eq.s32.totalorder %s30, 3
      %p211 = por %p209, %p210
      %p212 = scmp.ne.s32.totalorder %s201, %s202
      %p213 = scmp.eq.s32.totalorder %s30, 0
      %p214 = por %p212, %p213
      %p215 = scmp.ne.s32.totalorder %s201, %s202
      %p216 = scmp.eq.s32.totalorder %s31, 3
      %p217 = por %p215, %p216
      %p219 = scmp.ne.s32.totalorder %s202, %s218
      %p220 = scmp.eq.s32.totalorder %s31, 0
      %p221 = por %p219, %p220
      %s222 = ssub.s32 %s33, %s40
      %p223 = scmp.eq.s32.totalorder %s222, 0
      %s225 = sadd.s32 %s224, 1
      %s226 = scalar_select %p223, %s224, %s225
      %p229 = pneg %p223
      %p230 = scmp.eq.s32.totalorder %s25, 3
      %p231 = por %p229, %p230
      %p232 = scmp.ne.s32.totalorder %s224, %s227
      %p233 = scmp.eq.s32.totalorder %s25, 0
      %p234 = por %p232, %p233
      %p235 = scmp.ne.s32.totalorder %s224, %s227
      %p236 = scmp.eq.s32.totalorder %s30, 3
      %p237 = por %p235, %p236
      %p238 = scmp.ne.s32.totalorder %s227, %s228
      %p239 = scmp.eq.s32.totalorder %s30, 0
      %p240 = por %p238, %p239
      %p241 = scmp.ne.s32.totalorder %s227, %s228
      %p242 = scmp.eq.s32.totalorder %s31, 3
      %p243 = por %p241, %p242
      %p245 = scmp.ne.s32.totalorder %s228, %s244
      %p246 = scmp.eq.s32.totalorder %s31, 0
      %p247 = por %p245, %p246
      %s249 = sadd.s32 %s248, 1
      %p252 = scmp.eq.s32.totalorder %s25, 3
      %p253 = scmp.ne.s32.totalorder %s248, %s250
      %p254 = scmp.eq.s32.totalorder %s25, 0
      %p255 = por %p253, %p254
      %p256 = scmp.ne.s32.totalorder %s248, %s250
      %p257 = scmp.eq.s32.totalorder %s30, 3
      %p258 = por %p256, %p257
      %p259 = scmp.ne.s32.totalorder %s250, %s251
      %p260 = scmp.eq.s32.totalorder %s30, 0
      %p261 = por %p259, %p260
      %p262 = scmp.ne.s32.totalorder %s250, %s251
      %p263 = scmp.eq.s32.totalorder %s31, 3
      %p264 = por %p262, %p263
      %p266 = scmp.ne.s32.totalorder %s251, %s265
      %p267 = scmp.eq.s32.totalorder %s31, 0
      %p268 = por %p266, %p267
      %s270 = sadd.s32 %s269, 1
      %p273 = scmp.eq.s32.totalorder %s25, 3
      %p274 = scmp.ne.s32.totalorder %s269, %s271
      %p275 = scmp.eq.s32.totalorder %s25, 0
      %p276 = por %p274, %p275
      %p277 = scmp.ne.s32.totalorder %s269, %s271
      %p278 = scmp.eq.s32.totalorder %s30, 3
      %p279 = por %p277, %p278
      %p280 = scmp.ne.s32.totalorder %s271, %s272
      %p281 = scmp.eq.s32.totalorder %s30, 0
      %p282 = por %p280, %p281
      %p283 = scmp.ne.s32.totalorder %s271, %s272
      %p284 = scmp.eq.s32.totalorder %s31, 3
      %p285 = por %p283, %p284
      %p287 = scmp.ne.s32.totalorder %s272, %s286
      %p288 = scmp.eq.s32.totalorder %s31, 0
      %p289 = por %p287, %p288
      %s290 = ssub.s32 %s32, %s44
      %p291 = scmp.eq.s32.totalorder %s290, 0
      %s293 = sadd.s32 %s292, 1
      %s294 = scalar_select %p291, %s292, %s293
      %p297 = pneg %p291
      %p298 = scmp.eq.s32.totalorder %s25, 3
      %p299 = por %p297, %p298
      %p300 = scmp.ne.s32.totalorder %s292, %s295
      %p301 = scmp.eq.s32.totalorder %s25, 0
      %p302 = por %p300, %p301
      %p303 = scmp.ne.s32.totalorder %s292, %s295
      %p304 = scmp.eq.s32.totalorder %s30, 3
      %p305 = por %p303, %p304
      %p306 = scmp.ne.s32.totalorder %s295, %s296
      %p307 = scmp.eq.s32.totalorder %s30, 0
      %p308 = por %p306, %p307
      %p309 = scmp.ne.s32.totalorder %s295, %s296
      %p310 = scmp.eq.s32.totalorder %s31, 3
      %p311 = por %p309, %p310
      %p313 = scmp.ne.s32.totalorder %s296, %s312
      %p314 = scmp.eq.s32.totalorder %s31, 0
      %p315 = por %p313, %p314
      %p316 = scmp.le.s32.totalorder 1, %s25
      %p317 = scmp.lt.s32.totalorder %s25, 5
      %p318 = pnand %p316, %p317
      %p319 = pneg %p318
      // Predicated region
      $region9: #{tpu_custom_call.1} parent=5 // pred_check
        _
      $region10: #{tpu_custom_call.1} parent=5 // pred_check_branch
        %321 = sbr.rel (%p318) target = $region12
      $region11: #{tpu_custom_call.1} parent=5 // pred_region
        %s322 = ssub.s32 %s25, 1
        // Predicated region
        $region13: #{tpu_custom_call.1} parent=11 // pred_check
          %p323 = pneg %p84
        $region14: #{tpu_custom_call.1} parent=11 // pred_check_branch
          %325 = sbr.rel (%p323) target = $region16
        $region15: #{tpu_custom_call.1} parent=11 // pred_region
          _
        $region16: #{tpu_custom_call.1} parent=11 // pred_fallthru
          _
        // Predicated region
        $region17: #{tpu_custom_call.1} parent=11 // pred_check
          %p326 = pneg %p261
        $region18: #{tpu_custom_call.1} parent=11 // pred_check_branch
          %328 = sbr.rel (%p326) target = $region20
        $region19: #{tpu_custom_call.1} parent=11 // pred_region
          %330 = vsyncadd [#allocation7], 0
          %s331 = sshll.u32 %s8, 4
          %s332 = int_to_ptr.hbm [resolvable:$true] %s331
          %s333 = sshll.u32 [#allocation8], 4
          %s334 = int_to_ptr.vmem [resolvable:$true] %s333
          %339 = dma.hbm_to_vmem [thread:$0]  %s332, 256, %s334, [#allocation7], 64, 64, 4
        $region20: #{tpu_custom_call.1} parent=11 // pred_fallthru
          _
        // Predicated region
        $region21: #{tpu_custom_call.1} parent=11 // pred_check
          %p340 = pneg %p282
        $region22: #{tpu_custom_call.1} parent=11 // pred_check_branch
          %342 = sbr.rel (%p340) target = $region24
        $region23: #{tpu_custom_call.1} parent=11 // pred_region
          _
        $region24: #{tpu_custom_call.1} parent=11 // pred_fallthru
          _
      $region12: #{tpu_custom_call.1} parent=5 // pred_fallthru
        _
      %p343 = scmp.lt.s32.totalorder %s25, 4
      // Predicated region
      $region25: #{tpu_custom_call.1} parent=5 // pred_check
        %p344 = pneg %p343
      $region26: #{tpu_custom_call.1} parent=5 // pred_check_branch
        %346 = sbr.rel (%p344) target = $region28
      $region27: #{tpu_custom_call.1} parent=5 // pred_region
        // Predicated region
        $region29: #{tpu_custom_call.1} parent=27 // pred_check
          %p347 = pneg %p57
        $region30: #{tpu_custom_call.1} parent=27 // pred_check_branch
          %349 = sbr.rel (%p347) target = $region32
        $region31: #{tpu_custom_call.1} parent=27 // pred_region
          %p350 = scmp.lt.s32.totalorder %s32, 1
          %s351 = scalar_select %p350, %s32, 1
          %s352 = smul.addr %s351, 8
          %s353 = scalar_lea.vmem %s0, %s352
        $region32: #{tpu_custom_call.1} parent=27 // pred_fallthru
          _
        // Predicated region
        $region33: #{tpu_custom_call.1} parent=27 // pred_check
          %p354 = pneg %p104
        $region34: #{tpu_custom_call.1} parent=27 // pred_check_branch
          %356 = sbr.rel (%p354) target = $region36
        $region35: #{tpu_custom_call.1} parent=27 // pred_region
          %p357 = scmp.lt.s32.totalorder %s33, 1
          %s358 = scalar_select %p357, %s33, 1
          %s359 = smul.addr %s358, 12
          %s360 = smul.addr %s359, 4
          %s361 = scalar_lea.vmem %s2, %s360
        $region36: #{tpu_custom_call.1} parent=27 // pred_fallthru
          _
        // Predicated region
        $region37: #{tpu_custom_call.1} parent=27 // pred_check
          %p362 = pneg %p130
        $region38: #{tpu_custom_call.1} parent=27 // pred_check_branch
          %364 = sbr.rel (%p362) target = $region40
        $region39: #{tpu_custom_call.1} parent=27 // pred_region
          %p365 = scmp.lt.s32.totalorder %s33, 1
          %s366 = scalar_select %p365, %s33, 1
          %s367 = smul.addr %s366, 2
          %s368 = smul.addr %s367, 8
          %s369 = scalar_lea.vmem %s3, %s368
        $region40: #{tpu_custom_call.1} parent=27 // pred_fallthru
          _
        // Predicated region
        $region41: #{tpu_custom_call.1} parent=27 // pred_check
          %p370 = pneg %p156
        $region42: #{tpu_custom_call.1} parent=27 // pred_check_branch
          %372 = sbr.rel (%p370) target = $region44
        $region43: #{tpu_custom_call.1} parent=27 // pred_region
          %s373 = sand.u32 %s146, 1
          %s374 = scalar_lea.sflag [#allocation4], %s373
          %s375 = sand.u32 %s146, 1
          %s376 = smul.addr %s375, 16
          %s377 = scalar_lea.vmem [#allocation3], %s376
          %379 = vsyncadd %s374, 0
          %s380 = smul.addr %s33, 4
          %s381 = smul.addr %s380, 4
          %s382 = scalar_lea.hbm %s4, %s381
          %s383 = sshll.u32 %s382, 4
          %s384 = int_to_ptr.hbm [resolvable:$true] %s383
          %s385 = sshll.u32 %s377, 4
          %s386 = int_to_ptr.vmem [resolvable:$true] %s385
          %391 = dma.hbm_to_vmem [thread:$0]  %s384, 256, %s386, %s374, 64, 64, 4
        $region44: #{tpu_custom_call.1} parent=27 // pred_fallthru
          _
        // Predicated region
        $region45: #{tpu_custom_call.1} parent=27 // pred_check
          %p392 = pneg %p182
        $region46: #{tpu_custom_call.1} parent=27 // pred_check_branch
          %394 = sbr.rel (%p392) target = $region48
        $region47: #{tpu_custom_call.1} parent=27 // pred_region
          %s395 = sand.u32 %s25, 1
          %s396 = scalar_lea.sflag [#allocation7], %s395
          %s397 = sand.u32 %s172, 1
          %s398 = smul.addr %s397, 16
          %s399 = scalar_lea.vmem [#allocation6], %s398
          %401 = vsyncadd %s396, 0
          %s402 = smul.addr %s33, 4
          %s403 = smul.addr %s402, 4
          %s404 = scalar_lea.hbm %s5, %s403
          %s405 = sshll.u32 %s404, 4
          %s406 = int_to_ptr.hbm [resolvable:$true] %s405
          %s407 = sshll.u32 %s399, 4
          %s408 = int_to_ptr.vmem [resolvable:$true] %s407
          %413 = dma.hbm_to_vmem [thread:$0]  %s406, 256, %s408, %s396, 64, 64, 4
        $region48: #{tpu_custom_call.1} parent=27 // pred_fallthru
          _
        // Predicated region
        $region49: #{tpu_custom_call.1} parent=27 // pred_check
          %p414 = pneg %p208
        $region50: #{tpu_custom_call.1} parent=27 // pred_check_branch
          %416 = sbr.rel (%p414) target = $region52
        $region51: #{tpu_custom_call.1} parent=27 // pred_region
          %p417 = scmp.lt.s32.totalorder %s33, 1
          %s418 = scalar_select %p417, %s33, 1
          %s419 = scalar_lea.vmem %s6, %s418
        $region52: #{tpu_custom_call.1} parent=27 // pred_fallthru
          _
        // Predicated region
        $region53: #{tpu_custom_call.1} parent=27 // pred_check
          %p420 = pneg %p234
        $region54: #{tpu_custom_call.1} parent=27 // pred_check_branch
          %422 = sbr.rel (%p420) target = $region56
        $region55: #{tpu_custom_call.1} parent=27 // pred_region
          %p423 = scmp.lt.s32.totalorder %s33, 1
          %s424 = scalar_select %p423, %s33, 1
          %s425 = smul.addr %s424, 8
          %s426 = smul.addr %s425, 4
          %s427 = scalar_lea.vmem %s7, %s426
        $region56: #{tpu_custom_call.1} parent=27 // pred_fallthru
          _
      $region28: #{tpu_custom_call.1} parent=5 // pred_fallthru
        _
      %p428 = scmp.le.s32.totalorder 1, %s25
      %p429 = scmp.lt.s32.totalorder %s25, 5
      %p430 = pnand %p428, %p429
      %p431 = pneg %p430
      // Predicated region
      $region57: #{tpu_custom_call.1} parent=5 // pred_check
        _
      $region58: #{tpu_custom_call.1} parent=5 // pred_check_branch
        %433 = sbr.rel (%p430) target = $region60
      $region59: #{tpu_custom_call.1} parent=5 // pred_region
        %s434 = ssub.s32 %s25, 1
        %s435 = sand.u32 %s149, 1
        %s436 = scalar_lea.sflag [#allocation4], %s435
        %s437 = sand.u32 %s149, 1
        %s438 = smul.addr %s437, 16
        %s439 = scalar_lea.vmem [#allocation3], %s438
        // Predicated region
        $region61: #{tpu_custom_call.1} parent=59 // pred_check
          %p440 = pneg %p162
        $region62: #{tpu_custom_call.1} parent=59 // pred_check_branch
          %442 = sbr.rel (%p440) target = $region64
        $region63: #{tpu_custom_call.1} parent=59 // pred_region
          %444 = dma.done %s436, 256
        $region64: #{tpu_custom_call.1} parent=59 // pred_fallthru
          _
        %s445 = sand.u32 %s30, 1
        %s446 = scalar_lea.sflag [#allocation7], %s445
        %s447 = sand.u32 %s175, 1
        %s448 = smul.addr %s447, 16
        %s449 = scalar_lea.vmem [#allocation6], %s448
        // Predicated region
        $region65: #{tpu_custom_call.1} parent=59 // pred_check
          %p450 = pneg %p188
        $region66: #{tpu_custom_call.1} parent=59 // pred_check_branch
          %452 = sbr.rel (%p450) target = $region68
        $region67: #{tpu_custom_call.1} parent=59 // pred_region
          %454 = dma.done %s446, 256
        $region68: #{tpu_custom_call.1} parent=59 // pred_fallthru
          _
        // Predicated region
        $region69: #{tpu_custom_call.1} parent=59 // pred_check
          %p455 = pneg %p261
        $region70: #{tpu_custom_call.1} parent=59 // pred_check_branch
          %457 = sbr.rel (%p455) target = $region72
        $region71: #{tpu_custom_call.1} parent=59 // pred_region
          %459 = dma.done [#allocation7], 256
        $region72: #{tpu_custom_call.1} parent=59 // pred_fallthru
          _
        %p460 = scmp.lt.s32.totalorder %s34, 1
        %s461 = scalar_select %p460, %s34, 1
        %s462 = smul.addr %s461, 8
        %s463 = scalar_lea.vmem %s0, %s462
        %p464 = pneg %p63
        %p465 = pneg %p60
        %p466 = pneg %p84
        %p467 = pneg %p81
        %p468 = scmp.lt.s32.totalorder %s35, 1
        %s469 = scalar_select %p468, %s35, 1
        %s470 = smul.addr %s469, 12
        %s471 = smul.addr %s470, 4
        %s472 = scalar_lea.vmem %s2, %s471
        %p473 = pneg %p110
        %p474 = pneg %p107
        %p475 = scmp.lt.s32.totalorder %s35, 1
        %s476 = scalar_select %p475, %s35, 1
        %s477 = smul.addr %s476, 2
        %s478 = smul.addr %s477, 8
        %s479 = scalar_lea.vmem %s3, %s478
        %p480 = pneg %p136
        %p481 = pneg %p133
        %s482 = sand.u32 %s149, 1
        %s483 = scalar_lea.sflag [#allocation4], %s482
        %s484 = sand.u32 %s149, 1
        %s485 = smul.addr %s484, 16
        %s486 = scalar_lea.vmem [#allocation3], %s485
        %p487 = pneg %p162
        %p488 = pneg %p159
        %s489 = sand.u32 %s30, 1
        %s490 = scalar_lea.sflag [#allocation7], %s489
        %s491 = sand.u32 %s175, 1
        %s492 = smul.addr %s491, 16
        %s493 = scalar_lea.vmem [#allocation6], %s492
        %p494 = pneg %p188
        %p495 = pneg %p185
        %p496 = scmp.lt.s32.totalorder %s35, 1
        %s497 = scalar_select %p496, %s35, 1
        %s498 = scalar_lea.vmem %s6, %s497
        %p499 = pneg %p214
        %p500 = pneg %p211
        %p501 = scmp.lt.s32.totalorder %s35, 1
        %s502 = scalar_select %p501, %s35, 1
        %s503 = smul.addr %s502, 8
        %s504 = smul.addr %s503, 4
        %s505 = scalar_lea.vmem %s7, %s504
        %p506 = pneg %p240
        %p507 = pneg %p237
        %p508 = pneg %p261
        %p509 = pneg %p258
        %p510 = pneg %p282
        %p511 = pneg %p279
        %p512 = pneg %p308
        %p513 = pneg %p305
        %s514 = sand.u32 %s295, 1
        %s515 = scalar_lea.sflag [#allocation5], %s514
        %s516 = sand.u32 %s295, 1
        %s517 = smul.addr %s516, 8
        %s518 = scalar_lea.vmem [#allocation9], %s517
        %p519 = scmp.lt.s32.totalorder %s34, 1
        %s520 = scalar_select %p519, %s34, 1
        %s521 = smul.addr %s520, 8
        %s522 = scalar_lea.vmem %s0, %s521
        %p523 = scmp.lt.s32.totalorder %s35, 1
        %s524 = scalar_select %p523, %s35, 1
        %s525 = smul.addr %s524, 12
        %s526 = smul.addr %s525, 4
        %s527 = scalar_lea.vmem %s2, %s526
        %p528 = scmp.lt.s32.totalorder %s35, 1
        %s529 = scalar_select %p528, %s35, 1
        %s530 = smul.addr %s529, 2
        %s531 = smul.addr %s530, 8
        %s532 = scalar_lea.vmem %s3, %s531
        %p533 = scmp.lt.s32.totalorder %s35, 1
        %s534 = scalar_select %p533, %s35, 1
        %s535 = scalar_lea.vmem %s6, %s534
        %p536 = scmp.lt.s32.totalorder %s35, 1
        %s537 = scalar_select %p536, %s35, 1
        %s538 = smul.addr %s537, 8
        %s539 = smul.addr %s538, 4
        %s540 = scalar_lea.vmem %s7, %s539
        %p542 = scmp.eq.s32.totalorder %s35, 0
        // Predicated region
        $region73: #{tpu_custom_call.1} parent=59 // pred_check
          %p543 = pneg %p542
        $region74: #{tpu_custom_call.1} parent=59 // pred_check_branch
          %545 = sbr.rel (%p543) target = $region76
        $region75: #{tpu_custom_call.1} parent=59 // pred_region
          %v546 = vld [vmem:[%s1] sm:$0x3]
          %v547 = vld [vmem:[%s522] sm:$0xff]
          %vm548 = vcmask 261120
          %v549 = vsel %vm548, %v547, 0.0
          %550 = vadd.xlane.f32.xlu0 %v549
          %v551 = vpop.xlane.xlu0 %550
          %v552 = vrcp.pop 32.0
          %v553 = vmul.f32 32.0, %v552
          %v554 = vsub.f32 1.0, %v553
          %v555 = vmul.f32 %v552, %v554
          %v556 = vadd.f32 %v552, %v555
          %vm557 = vweird.f32 %v552
          %v558 = vsel %vm557, %v552, %v556
          %v559 = vmul.f32 %v551, %v558
          %v560 = vmul.f32 %v547, %v547
          %v561 = vsel %vm548, %v560, 0.0
          %562 = vadd.xlane.f32.xlu0 %v561
          %v563 = vpop.xlane.xlu0 %562
          %v564 = vmul.f32 %v563, %v558
          %v565 = vmul.f32 %v559, %v559
          %v566 = vsub.f32 %v564, %v565
          %v567 = vsub.f32 %v547, %v559
          %v568 = vadd.f32 %v566, 1e-12
          %v569 = vrsqrt.pop %v568
          %v570 = vmul.f32 %v569, %v568
          %v571 = vmul.f32 %v570, %v569
          %v572 = vmul.f32 0.5, %v571
          %v573 = vsub.f32 1.5, %v572
          %v574 = vmul.f32 %v569, %v573
          %vm575 = vweird.f32 %v568
          %vm576 = vweird.f32 %v569
          %vm577 = vmor %vm575, %vm576
          %v578 = vsel %vm577, %v569, %v574
          %v579 = vmul.f32 %v567, %v578
          %v580 = vperm.slane %v546, 0
          %v581 = vmul.f32 %v579, %v580
          %v582 = vperm.slane %v546, 1
          %v583 = vadd.f32 %v581, %v582
          %584 = vst.msk [vmem:[#allocation2] sm:$0xff] %vm548, %v583
        $region76: #{tpu_custom_call.1} parent=59 // pred_fallthru
          _
        %v585 = vld [vmem:[#allocation2] sm:$0xff]
        %v586 = vld [vmem:[%s532] sm:$0xff]
        %v587 = vld [vmem:[%s532 + $0x8] sm:$0x1]
        %v588 = vpack.c.bf16 %v585, %v585
        %v589 = vld [vmem:[%s527] sm:$0xf]
        %v590 = vld [vmem:[%s527 + $0x4] sm:$0xf]
        %v591 = vld [vmem:[%s527 + $0x8] sm:$0xf]
        %v592 = vld [vmem:[%s527 + $0xc] sm:$0xf]
        %v593 = vperm.slane %v586, 0
        %v598 = vunpack.c.l.b16 %v589
        %v599 = vunpack.c.l.b16 %v590
        %v600 = vunpack.c.l.b16 %v591
        %v601 = vunpack.c.l.b16 %v592
        %v602 = vpack.c.b16 %v599, %v598
        %v603 = vpack.c.b16 %v601, %v600
        %vm606 = vcmask 261120
        %v608 = vsel %vm606, %v588, 0
        %610 = vmatpush.bf16.msra.mxu0 0
        %611 = vmatpush.bf16.msra.mxu0 0
        %612 = vmatpush.bf16.msra.mxu0 0
        %613 = vmatpush.bf16.msra.mxu0 0
        %614 = vmatpush.bf16.msra.mxu0 0
        %615 = vmatpush.bf16.msra.mxu0 0
        %616 = vmatpush.bf16.msra.mxu0 %v603
        %617 = vmatpush.bf16.msra.mxu0 %v602
        %618 = vmatmul.bf16.gmra.mxu0 %v608
        %v619 = vpop.f32.mrf.mxu0
        %v620 = vadd.f32 %v593, %v619
        %v621 = vpop.f32.mrf.mxu0
        %622 = vdwg.mxu0
        %s623 = scalar_lea.vmem %s527, 16
        %v624 = vld [vmem:[%s623] sm:$0xf]
        %v625 = vld [vmem:[%s623 + $0x4] sm:$0xf]
        %v626 = vld [vmem:[%s623 + $0x8] sm:$0xf]
        %v627 = vld [vmem:[%s623 + $0xc] sm:$0xf]
        %v628 = vperm.slane %v586, 1
        %v633 = vunpack.c.l.b16 %v624
        %v634 = vunpack.c.l.b16 %v625
        %v635 = vunpack.c.l.b16 %v626
        %v636 = vunpack.c.l.b16 %v627
        %v637 = vpack.c.b16 %v634, %v633
        %v638 = vpack.c.b16 %v636, %v635
        %641 = vmatpush.bf16.msra.mxu0 0
        %642 = vmatpush.bf16.msra.mxu0 0
        %643 = vmatpush.bf16.msra.mxu0 0
        %644 = vmatpush.bf16.msra.mxu0 0
        %645 = vmatpush.bf16.msra.mxu0 0
        %646 = vmatpush.bf16.msra.mxu0 0
        %647 = vmatpush.bf16.msra.mxu0 %v638
        %648 = vmatpush.bf16.msra.mxu0 %v637
        %649 = vmatmul.bf16.gmra.mxu0 %v608
        %v650 = vpop.f32.mrf.mxu0
        %v651 = vadd.f32 %v628, %v650
        %v652 = vpop.f32.mrf.mxu0
        %653 = vdwg.mxu0
        %s654 = scalar_lea.vmem %s527, 32
        %v655 = vld [vmem:[%s654] sm:$0xf]
        %v656 = vld [vmem:[%s654 + $0x4] sm:$0xf]
        %v657 = vld [vmem:[%s654 + $0x8] sm:$0xf]
        %v658 = vld [vmem:[%s654 + $0xc] sm:$0xf]
        %v659 = vperm.slane %v586, 2
        %v664 = vunpack.c.l.b16 %v655
        %v665 = vunpack.c.l.b16 %v656
        %v666 = vunpack.c.l.b16 %v657
        %v667 = vunpack.c.l.b16 %v658
        %v668 = vpack.c.b16 %v665, %v664
        %v669 = vpack.c.b16 %v667, %v666
        %672 = vmatpush.bf16.msra.mxu0 0
        %673 = vmatpush.bf16.msra.mxu0 0
        %674 = vmatpush.bf16.msra.mxu0 0
        %675 = vmatpush.bf16.msra.mxu0 0
        %676 = vmatpush.bf16.msra.mxu0 0
        %677 = vmatpush.bf16.msra.mxu0 0
        %678 = vmatpush.bf16.msra.mxu0 %v669
        %679 = vmatpush.bf16.msra.mxu0 %v668
        %680 = vmatmul.bf16.gmra.mxu0 %v608
        %v681 = vpop.f32.mrf.mxu0
        %v682 = vadd.f32 %v659, %v681
        %v683 = vpop.f32.mrf.mxu0
        %684 = vdwg.mxu0
        %686 = vrot.lane.b32.xlu0 %v620, 112
        %v687 = vpop.permute.xlu0 %686
        %v689 = vpack.c.bf16 %v620, %v620
        %v690 = vpack.c.bf16 %v687, %v687
        %692 = vrot.lane.b32.xlu0 %v651, 112
        %v693 = vpop.permute.xlu0 %692
        %v695 = vpack.c.bf16 %v651, %v651
        %v696 = vpack.c.bf16 %v693, %v693
        %698 = vrot.lane.b32.xlu0 %v682, 112
        %v699 = vpop.permute.xlu0 %698
        %v701 = vpack.c.bf16 %v682, %v682
        %v702 = vpack.c.bf16 %v699, %v699
        %vm703 = vcmask 130048
        %v705 = vsel %vm703, %v689, 0
        %v708 = vsel %vm703, %v695, 0
        %710 = vmatpush.bf16.xpose.msra.mxu0 0
        %711 = vmatpush.bf16.xpose.msra.mxu0 0
        %712 = vmatpush.bf16.xpose.msra.mxu0 0
        %713 = vmatpush.bf16.xpose.msra.mxu0 0
        %714 = vmatpush.bf16.xpose.msra.mxu0 0
        %715 = vmatpush.bf16.xpose.msra.mxu0 0
        %716 = vmatpush.bf16.xpose.msra.mxu0 0
        %717 = vmatpush.bf16.xpose.msra.mxu0 %v708
        %718 = vmatmul.bf16.gmra.mxu0 %v705
        %v719 = vpop.f32.mrf.mxu0
        %v720 = vadd.f32 0.0, %v719
        %v721 = vpop.f32.mrf.mxu0
        %722 = vdwg.mxu0
        %v724 = vsel %vm703, %v690, 0
        %v727 = vsel %vm703, %v696, 0
        %729 = vmatpush.bf16.xpose.msra.mxu0 0
        %730 = vmatpush.bf16.xpose.msra.mxu0 0
        %731 = vmatpush.bf16.xpose.msra.mxu0 0
        %732 = vmatpush.bf16.xpose.msra.mxu0 0
        %733 = vmatpush.bf16.xpose.msra.mxu0 0
        %734 = vmatpush.bf16.xpose.msra.mxu0 0
        %735 = vmatpush.bf16.xpose.msra.mxu0 0
        %736 = vmatpush.bf16.xpose.msra.mxu0 %v727
        %737 = vmatmul.bf16.gmra.mxu0 %v724
        %v738 = vpop.f32.mrf.mxu0
        %v739 = vadd.f32 0.0, %v738
        %v740 = vpop.f32.mrf.mxu0
        %741 = vdwg.mxu0
        %v742 = vmul.f32 %v720, 0.25
        %v743 = vmul.f32 %v739, 0.25
        %vm744 = vcmask 64512
        %v745 = vsel %vm744, %v742, -inf
        %746 = vmax.xlane.f32.xlu0 %v745
        %v747 = vpop.xlane.xlu0 %746
        %v748 = vsel %vm744, %v743, -inf
        %749 = vmax.xlane.f32.xlu0 %v748
        %v750 = vpop.xlane.xlu0 %749
        %v751 = vsub.f32 %v742, %v747
        %v752 = vsub.f32 %v743, %v750
        %v753 = vmul.f32 %v751, 1.442695
        %v754 = vpow.pop %v753
        %v755 = vmul.f32 %v752, 1.442695
        %v756 = vpow.pop %v755
        %v757 = vsel %vm744, %v754, 0.0
        %758 = vadd.xlane.f32.xlu0 %v757
        %v759 = vpop.xlane.xlu0 %758
        %v760 = vsel %vm744, %v756, 0.0
        %761 = vadd.xlane.f32.xlu0 %v760
        %v762 = vpop.xlane.xlu0 %761
        %v763 = vrcp.pop %v759
        %v764 = vrcp.pop %v762
        %v765 = vmul.f32 %v754, %v763
        %v766 = vmul.f32 %v756, %v764
        %v767 = vpack.c.bf16 %v765, %v765
        %v768 = vpack.c.bf16 %v766, %v766
        %v770 = vsel %vm744, %v767, 0
        %vm772 = vcmask 1043456
        %v774 = vsel %vm772, %v701, 0
        %776 = vmatpush.bf16.msra.mxu0 0
        %777 = vmatpush.bf16.msra.mxu0 0
        %778 = vmatpush.bf16.msra.mxu0 0
        %779 = vmatpush.bf16.msra.mxu0 0
        %780 = vmatpush.bf16.msra.mxu0 0
        %781 = vmatpush.bf16.msra.mxu0 0
        %782 = vmatpush.bf16.msra.mxu0 0
        %783 = vmatpush.bf16.msra.mxu0 %v774
        %784 = vmatmul.bf16.gmra.mxu0 %v770
        %v785 = vpop.f32.mrf.mxu0
        %v786 = vadd.f32 0.0, %v785
        %v787 = vpop.f32.mrf.mxu0
        %788 = vdwg.mxu0
        %v790 = vsel %vm744, %v768, 0
        %v793 = vsel %vm772, %v702, 0
        %795 = vmatpush.bf16.msra.mxu0 0
        %796 = vmatpush.bf16.msra.mxu0 0
        %797 = vmatpush.bf16.msra.mxu0 0
        %798 = vmatpush.bf16.msra.mxu0 0
        %799 = vmatpush.bf16.msra.mxu0 0
        %800 = vmatpush.bf16.msra.mxu0 0
        %801 = vmatpush.bf16.msra.mxu0 0
        %802 = vmatpush.bf16.msra.mxu0 %v793
        %803 = vmatmul.bf16.gmra.mxu0 %v790
        %v804 = vpop.f32.mrf.mxu0
        %v805 = vadd.f32 0.0, %v804
        %v806 = vpop.f32.mrf.mxu0
        %807 = vdwg.mxu0
        %809 = vrot.lane.b32.xlu0 %v805, 16
        %v810 = vpop.permute.xlu0 %809
        %v812 = vsel %vm703, %v786, %v810
        %v813 = vpack.c.bf16 %v812, %v812
        %v814 = vld [vmem:[%s439] sm:$0xf]
        %v815 = vld [vmem:[%s439 + $0x4] sm:$0xf]
        %v816 = vld [vmem:[%s439 + $0x8] sm:$0xf]
        %v817 = vld [vmem:[%s439 + $0xc] sm:$0xf]
        %v818 = vperm.slane %v586, 3
        %v823 = vunpack.c.l.b16 %v814
        %v824 = vunpack.c.l.b16 %v815
        %v825 = vunpack.c.l.b16 %v816
        %v826 = vunpack.c.l.b16 %v817
        %v827 = vpack.c.b16 %v824, %v823
        %v828 = vpack.c.b16 %v826, %v825
        %v832 = vsel %vm606, %v813, 0
        %834 = vmatpush.bf16.msra.mxu0 0
        %835 = vmatpush.bf16.msra.mxu0 0
        %836 = vmatpush.bf16.msra.mxu0 0
        %837 = vmatpush.bf16.msra.mxu0 0
        %838 = vmatpush.bf16.msra.mxu0 0
        %839 = vmatpush.bf16.msra.mxu0 0
        %840 = vmatpush.bf16.msra.mxu0 %v828
        %841 = vmatpush.bf16.msra.mxu0 %v827
        %842 = vmatmul.bf16.gmra.mxu0 %v832
        %v843 = vpop.f32.mrf.mxu0
        %v844 = vadd.f32 %v818, %v843
        %v845 = vpop.f32.mrf.mxu0
        %846 = vdwg.mxu0
        %v847 = vadd.f32 %v585, %v844
        %v848 = vsel %vm606, %v847, 0.0
        %849 = vadd.xlane.f32.xlu0 %v848
        %v850 = vpop.xlane.xlu0 %849
        %v851 = vrcp.pop 32.0
        %v852 = vmul.f32 32.0, %v851
        %v853 = vsub.f32 1.0, %v852
        %v854 = vmul.f32 %v851, %v853
        %v855 = vadd.f32 %v851, %v854
        %vm856 = vweird.f32 %v851
        %v857 = vsel %vm856, %v851, %v855
        %v858 = vmul.f32 %v850, %v857
        %v859 = vmul.f32 %v847, %v847
        %v860 = vsel %vm606, %v859, 0.0
        %861 = vadd.xlane.f32.xlu0 %v860
        %v862 = vpop.xlane.xlu0 %861
        %v863 = vmul.f32 %v862, %v857
        %v864 = vmul.f32 %v858, %v858
        %v865 = vsub.f32 %v863, %v864
        %v866 = vsub.f32 %v847, %v858
        %v867 = vadd.f32 %v865, 1e-12
        %v868 = vrsqrt.pop %v867
        %v869 = vmul.f32 %v868, %v867
        %v870 = vmul.f32 %v869, %v868
        %v871 = vmul.f32 0.5, %v870
        %v872 = vsub.f32 1.5, %v871
        %v873 = vmul.f32 %v868, %v872
        %vm874 = vweird.f32 %v867
        %vm875 = vweird.f32 %v868
        %vm876 = vmor %vm874, %vm875
        %v877 = vsel %vm876, %v868, %v873
        %v878 = vmul.f32 %v866, %v877
        %v879 = vperm.slane %v586, 4
        %v880 = vmul.f32 %v878, %v879
        %v881 = vperm.slane %v586, 5
        %v882 = vadd.f32 %v880, %v881
        %v883 = vpack.c.bf16 %v882, %v882
        %v884 = vld [vmem:[%s449] sm:$0xf]
        %v885 = vld [vmem:[%s449 + $0x4] sm:$0xf]
        %v886 = vld [vmem:[%s449 + $0x8] sm:$0xf]
        %v887 = vld [vmem:[%s449 + $0xc] sm:$0xf]
        %v888 = vld [vmem:[%s535] sm:$0x1]
        %v890 = vperm.slane %v888, 0
        %v896 = vunpack.c.l.b16 %v884
        %v897 = vunpack.c.l.b16 %v885
        %v898 = vunpack.c.l.b16 %v886
        %v899 = vunpack.c.l.b16 %v887
        %v900 = vpack.c.b16 %v897, %v896
        %v901 = vpack.c.b16 %v899, %v898
        %v905 = vsel %vm606, %v883, 0
        %907 = vmatpush.bf16.msra.mxu0 0
        %908 = vmatpush.bf16.msra.mxu0 0
        %909 = vmatpush.bf16.msra.mxu0 0
        %910 = vmatpush.bf16.msra.mxu0 0
        %911 = vmatpush.bf16.msra.mxu0 0
        %912 = vmatpush.bf16.msra.mxu0 0
        %913 = vmatpush.bf16.msra.mxu0 %v901
        %914 = vmatpush.bf16.msra.mxu0 %v900
        %915 = vmatmul.bf16.gmra.mxu0 %v905
        %v916 = vpop.f32.mrf.mxu0
        %v917 = vadd.f32 %v890, %v916
        %v918 = vpop.f32.mrf.mxu0
        %919 = vdwg.mxu0
        %v920 = vmul.f32 %v917, 0.5
        %v921 = vmul.f32 %v917, 0.044715
        %v922 = vmul.f32 %v921, %v917
        %v923 = vmul.f32 %v922, %v917
        %v924 = vadd.f32 %v917, %v923
        %v925 = vmul.f32 %v924, 0.7978846
        %v926 = vtanh.pop %v925
        %v927 = vadd.f32 %v926, 1.0
        %v928 = vmul.f32 %v920, %v927
        %v929 = vpack.c.bf16 %v928, %v928
        %v930 = vld [vmem:[%s540] sm:$0xf]
        %v931 = vld [vmem:[%s540 + $0x4] sm:$0xf]
        %v932 = vld [vmem:[%s540 + $0x8] sm:$0xf]
        %v933 = vld [vmem:[%s540 + $0xc] sm:$0xf]
        %v934 = vld [vmem:[%s540 + $0x10] sm:$0xf]
        %v935 = vld [vmem:[%s540 + $0x14] sm:$0xf]
        %v936 = vld [vmem:[%s540 + $0x18] sm:$0xf]
        %v937 = vld [vmem:[%s540 + $0x1c] sm:$0xf]
        %v938 = vperm.slane %v586, 6
        %v947 = vunpack.c.l.b16 %v930
        %v948 = vunpack.c.l.b16 %v931
        %v949 = vunpack.c.l.b16 %v932
        %v950 = vunpack.c.l.b16 %v933
        %v951 = vunpack.c.l.b16 %v934
        %v952 = vunpack.c.l.b16 %v935
        %v953 = vunpack.c.l.b16 %v936
        %v954 = vunpack.c.l.b16 %v937
        %v955 = vpack.c.b16 %v948, %v947
        %v956 = vpack.c.b16 %v950, %v949
        %v957 = vpack.c.b16 %v952, %v951
        %v958 = vpack.c.b16 %v954, %v953
        %vm963 = vcmask 523264
        %v965 = vsel %vm963, %v929, 0
        %967 = vmatpush.bf16.msra.mxu0 0
        %968 = vmatpush.bf16.msra.mxu0 0
        %969 = vmatpush.bf16.msra.mxu0 0
        %970 = vmatpush.bf16.msra.mxu0 0
        %971 = vmatpush.bf16.msra.mxu0 %v958
        %972 = vmatpush.bf16.msra.mxu0 %v957
        %973 = vmatpush.bf16.msra.mxu0 %v956
        %974 = vmatpush.bf16.msra.mxu0 %v955
        %975 = vmatmul.bf16.gmra.mxu0 %v965
        %v976 = vpop.f32.mrf.mxu0
        %v977 = vadd.f32 %v938, %v976
        %v978 = vpop.f32.mrf.mxu0
        %979 = vdwg.mxu0
        %v980 = vadd.f32 %v882, %v977
        %v981 = vsel %vm606, %v980, 0.0
        %982 = vadd.xlane.f32.xlu0 %v981
        %v983 = vpop.xlane.xlu0 %982
        %v984 = vmul.f32 %v983, %v857
        %v985 = vmul.f32 %v980, %v980
        %v986 = vsel %vm606, %v985, 0.0
        %987 = vadd.xlane.f32.xlu0 %v986
        %v988 = vpop.xlane.xlu0 %987
        %v989 = vmul.f32 %v988, %v857
        %v990 = vmul.f32 %v984, %v984
        %v991 = vsub.f32 %v989, %v990
        %v992 = vsub.f32 %v980, %v984
        %v993 = vadd.f32 %v991, 1e-12
        %v994 = vrsqrt.pop %v993
        %v995 = vmul.f32 %v994, %v993
        %v996 = vmul.f32 %v995, %v994
        %v997 = vmul.f32 0.5, %v996
        %v998 = vsub.f32 1.5, %v997
        %v999 = vmul.f32 %v994, %v998
        %vm1000 = vweird.f32 %v993
        %vm1001 = vweird.f32 %v994
        %vm1002 = vmor %vm1000, %vm1001
        %v1003 = vsel %vm1002, %v994, %v999
        %v1004 = vmul.f32 %v992, %v1003
        %v1005 = vperm.slane %v586, 7
        %v1006 = vmul.f32 %v1004, %v1005
        %v1007 = vperm.slane %v587, 0
        %v1008 = vadd.f32 %v1006, %v1007
        %1009 = vst.msk [vmem:[#allocation2] sm:$0xff] %vm606, %v1008
        %p1010 = scmp.eq.s32.totalorder %s35, 1
        // Predicated region
        $region77: #{tpu_custom_call.1} parent=59 // pred_check
          %p1011 = pneg %p1010
        $region78: #{tpu_custom_call.1} parent=59 // pred_check_branch
          %1013 = sbr.rel (%p1011) target = $region80
        $region79: #{tpu_custom_call.1} parent=59 // pred_region
          %v1014 = vpack.c.bf16 %v1008, %v1008
          %v1015 = vld [vmem:[#allocation8] sm:$0xf]
          %v1016 = vld [vmem:[#allocation8 + $0x4] sm:$0xf]
          %v1017 = vld [vmem:[#allocation8 + $0x8] sm:$0xf]
          %v1018 = vld [vmem:[#allocation8 + $0xc] sm:$0xf]
          %v1019 = vld [vmem:[%s9] sm:$0x1]
          %v1021 = vperm.slane %v1019, 0
          %v1027 = vunpack.c.l.b16 %v1015
          %v1028 = vunpack.c.l.b16 %v1016
          %v1029 = vunpack.c.l.b16 %v1017
          %v1030 = vunpack.c.l.b16 %v1018
          %v1031 = vpack.c.b16 %v1028, %v1027
          %v1032 = vpack.c.b16 %v1030, %v1029
          %v1036 = vsel %vm606, %v1014, 0
          %1038 = vmatpush.bf16.msra.mxu0 0
          %1039 = vmatpush.bf16.msra.mxu0 0
          %1040 = vmatpush.bf16.msra.mxu0 0
          %1041 = vmatpush.bf16.msra.mxu0 0
          %1042 = vmatpush.bf16.msra.mxu0 0
          %1043 = vmatpush.bf16.msra.mxu0 0
          %1044 = vmatpush.bf16.msra.mxu0 %v1032
          %1045 = vmatpush.bf16.msra.mxu0 %v1031
          %1046 = vmatmul.bf16.gmra.mxu0 %v1036
          %v1047 = vpop.f32.mrf.mxu0
          %v1048 = vadd.f32 %v1021, %v1047
          %v1049 = vpop.f32.mrf.mxu0
          %1050 = vdwg.mxu0
          %1051 = vst [vmem:[%s518] sm:$0xff] %v1048
        $region80: #{tpu_custom_call.1} parent=59 // pred_fallthru
          _
        %s1052 = sand.u32 %s295, 1
        %s1053 = scalar_lea.sflag [#allocation5], %s1052
        %s1054 = sand.u32 %s295, 1
        %s1055 = smul.addr %s1054, 8
        %s1056 = scalar_lea.vmem [#allocation9], %s1055
        // Predicated region
        $region81: #{tpu_custom_call.1} parent=59 // pred_check
          %p1057 = pneg %p305
        $region82: #{tpu_custom_call.1} parent=59 // pred_check_branch
          %1059 = sbr.rel (%p1057) target = $region84
        $region83: #{tpu_custom_call.1} parent=59 // pred_region
          %1061 = vsyncadd %s1053, 0
          %s1062 = smul.addr %s34, 8
          %s1063 = scalar_lea.hbm %s10, %s1062
          %s1065 = sshll.u32 %s1056, 4
          %s1066 = int_to_ptr.vmem [resolvable:$true] %s1065
          %s1067 = sshll.u32 %s1063, 4
          %s1068 = int_to_ptr.hbm [resolvable:$true] %s1067
          %1070 = dma.vmem_to_hbm [thread:$0]  %s1066, 128, %s1068, %s1053
        $region84: #{tpu_custom_call.1} parent=59 // pred_fallthru
          _
      $region60: #{tpu_custom_call.1} parent=5 // pred_fallthru
        _
      %p1071 = scmp.le.s32.totalorder 2, %s25
      // Predicated region
      $region85: #{tpu_custom_call.1} parent=5 // pred_check
        %p1072 = pneg %p1071
      $region86: #{tpu_custom_call.1} parent=5 // pred_check_branch
        %1074 = sbr.rel (%p1072) target = $region88
      $region87: #{tpu_custom_call.1} parent=5 // pred_region
        %s1075 = ssub.s32 %s25, 2
        // Predicated region
        $region89: #{tpu_custom_call.1} parent=87 // pred_check
          %p1076 = pneg %p311
        $region90: #{tpu_custom_call.1} parent=87 // pred_check_branch
          %1078 = sbr.rel (%p1076) target = $region92
        $region91: #{tpu_custom_call.1} parent=87 // pred_region
          %s1079 = sand.u32 %s296, 1
          %s1080 = scalar_lea.sflag [#allocation5], %s1079
          %s1081 = sand.u32 %s296, 1
          %s1082 = smul.addr %s1081, 8
          %s1083 = scalar_lea.vmem [#allocation9], %s1082
          %1085 = dma.done %s1080, 128
        $region92: #{tpu_custom_call.1} parent=87 // pred_fallthru
          _
      $region88: #{tpu_custom_call.1} parent=5 // pred_fallthru
        _
    $region6: #{tpu_custom_call.1} parent=1 // loop_footer
      %s29 = sadd.s32 1, %s25
    $region7: #{tpu_custom_call.1} parent=1 // loop_footer_branch
      %24 = sbr.rel target = $region3
    $region8: #{tpu_custom_call.1} parent=1 // loop_exit
      _
    %1086 = vsyncpa [#allocation4], 1
    %s1087 = scalar_lea.sflag [#allocation4], 1
    %1088 = vsyncpa %s1087, 1
    %1089 = vsyncpa [#allocation7], 1
    %s1090 = scalar_lea.sflag [#allocation7], 1
    %1091 = vsyncpa %s1090, 1
    %1092 = vsyncpa [#allocation5], 1
    %s1093 = scalar_lea.sflag [#allocation5], 1
    %1094 = vsyncpa %s1093, 1

</llo_original>
